<compile_context>
chip_gen: v7x
topology: tpu7x:2x2x1
jax: 0.10.0
libtpu: 0.0.40
codegen_flags: <defaults>
</compile_context>

<pallas_src>
import math

import jax
import jax.numpy as jnp
from jax import lax
from jax.experimental import pallas as pl
from jax.experimental.pallas import tpu as pltpu


def _subgraph_encoder_kernel(x_ref, adj_ref, w1_ref, b1_ref, w2_ref, b2_ref, o_ref):
    bt, n, _ = adj_ref.shape          # Bt meta-batch elements per grid step
    k = w1_ref.shape[1]               # 2*nhid
    hp = w2_ref.shape[1]              # nhid padded to a multiple of 128 (lane-dense)

    x = x_ref[...]                    # (Bt*N, F)  bf16
    a = adj_ref[...]                  # (Bt, N, N) bf16

    # --- gc1: relu(adj @ (x @ W1) + b1) ---
    # Weight matmul merged across the whole block: one (Bt*N, F) @ (F, K) MXU pass.
    s1 = jnp.dot(x, w1_ref[...], preferred_element_type=jnp.float32)       # (Bt*N, K) f32
    s1 = s1.reshape(bt, n, k)          # free when N % 8 == 0 (same VMEM tiling)
    h = lax.dot_general(a, s1.astype(jnp.bfloat16),
                        (((2,), (1,)), ((0,), (0,))),
                        preferred_element_type=jnp.float32)                # (Bt, N, K) f32
    h = jnp.maximum(h + b1_ref[...], 0.0)

    # TODO(synk): training-mode F.dropout between gc1/gc2 not implemented (eval-mode path).

    # --- gc2: adj^T @ (h @ W2) + b2 ---
    s2 = jnp.dot(h.reshape(bt * n, k).astype(jnp.bfloat16), w2_ref[...],
                 preferred_element_type=jnp.float32)                       # (Bt*N, Hp) f32
    s2 = s2.reshape(bt, n, hp)
    # adj^T folded into the contraction (contract lhs dim 1) -> no transpose copy.
    y = lax.dot_general(a, s2.astype(jnp.bfloat16),
                        (((1,), (1,)), ((0,), (0,))),
                        preferred_element_type=jnp.float32)                # (Bt, N, Hp) f32
    o_ref[...] = (y + b2_ref[...]).astype(o_ref.dtype)


def _choose_block_b(B, N, F, Hp, vmem_budget=24 << 20):
    """Largest divisor of B whose double-buffered tiles fit the VMEM budget while
    keeping >= 4 grid steps (per the pipelining guidance) whenever B allows."""
    def tile_bytes(bt):
        # double-buffered x (bf16) + adj (bf16) + out (f32) blocks
        return 2 * (bt * N * F * 2 + bt * N * N * 2 + bt * N * Hp * 4)

    fitting = [bt for bt in range(1, B + 1)
               if B % bt == 0 and tile_bytes(bt) <= vmem_budget]
    if not fitting:
        return 1
    with_steps = [bt for bt in fitting if B // bt >= 4]
    return max(with_steps) if with_steps else max(fitting)


def subgraph_encoder_forward(x, adj, w1, b1, w2, b2, *, block_b=None):
    """Fused SubGraphEncoder forward (eval mode).

    x:   (B, N, nfeat)      adj: (B, N, N)
    w1:  (nfeat, 2*nhid)    b1:  (1, 2*nhid)
    w2:  (2*nhid, nhid)     b2:  (N, nhid)
    returns (B, N, nhid), dtype of x.
    """
    B, N, Fdim = x.shape
    K = w1.shape[1]   # 2*nhid
    H = w2.shape[1]   # nhid
    assert adj.shape == (B, N, N)
    assert w1.shape == (Fdim, K) and b1.shape == (1, K)
    assert w2.shape == (K, H) and b2.shape == (N, H)
    out_dtype = x.dtype

    # Lane-dense output: pad nhid up to a multiple of 128 (zero columns), slice after.
    Hp = -(-H // 128) * 128
    if Hp != H:
        w2p = jnp.pad(w2, ((0, 0), (0, Hp - H)))
        b2p = jnp.pad(b2, ((0, 0), (0, Hp - H)))
    else:
        w2p, b2p = w2, b2

    # bf16 HBM streams for the MXU operands; biases stay f32 (accumulation is f32).
    x_bf = x.reshape(B * N, Fdim).astype(jnp.bfloat16)   # pre-flattened -> merged matmul M dim
    adj_bf = adj.astype(jnp.bfloat16)
    w1_bf = w1.astype(jnp.bfloat16)
    w2_bf = w2p.astype(jnp.bfloat16)
    b1_f = b1.astype(jnp.float32)
    b2_f = b2p.astype(jnp.float32)

    if block_b is None:
        block_b = _choose_block_b(B, N, Fdim, Hp)
    assert B % block_b == 0, (B, block_b)
    grid_b = B // block_b

    # VMEM budget (explicit, v7x-safe): double-buffered streaming tiles + resident weights.
    tile_bytes = 2 * (block_b * N * Fdim * 2 + block_b * N * N * 2 + block_b * N * Hp * 4)
    resident_bytes = Fdim * K * 2 + K * 4 + K * Hp * 2 + N * Hp * 4
    vmem_limit = int(min(max(4 * (tile_bytes + resident_bytes), 8 << 20), 32 << 20))

    cost = pl.CostEstimate(
        flops=2 * B * N * (Fdim * K + N * K + K * Hp + N * Hp),
        transcendentals=0,
        bytes_accessed=(2 * (B * N * Fdim + B * N * N + Fdim * K + K * Hp)
                        + 4 * (K + N * Hp + B * N * Hp)),
    )

    out = pl.pallas_call(
        _subgraph_encoder_kernel,
        out_shape=jax.ShapeDtypeStruct((B, N, Hp), out_dtype),
        grid=(grid_b,),
        in_specs=[
            pl.BlockSpec((block_b * N, Fdim), lambda b: (b, 0)),   # x: streamed, pipelined
            pl.BlockSpec((block_b, N, N), lambda b: (b, 0, 0)),    # adj: streamed, pipelined
            pl.BlockSpec((Fdim, K), lambda b: (0, 0)),             # W1: VMEM-resident
            pl.BlockSpec((1, K), lambda b: (0, 0)),                # b1: VMEM-resident
            pl.BlockSpec((K, Hp), lambda b: (0, 0)),               # W2: VMEM-resident
            pl.BlockSpec((N, Hp), lambda b: (0, 0)),               # b2: VMEM-resident
        ],
        out_specs=pl.BlockSpec((block_b, N, Hp), lambda b: (b, 0, 0)),
        compiler_params=pltpu.CompilerParams(
            dimension_semantics=("parallel",),   # batch-tile axis shards across TCs (v7x)
            vmem_limit_bytes=vmem_limit,
        ),
        cost_estimate=cost,
    )(x_bf, adj_bf, w1_bf, b1_f, w2_bf, b2_f)

    return out[..., :H] if Hp != H else out


class SubGraphEncoderPallas:
    """JAX/Pallas equivalent of BMPCN.SubGraphEncoder (eval mode)."""

    def __init__(self, nfeat, nhid, num_sample, dropout, key):
        self.nfeat = nfeat
        self.nhid = nhid
        self.num_sample = num_sample
        self.dropout = dropout

        k1, k2, k3, k4 = jax.random.split(key, 4)
        # gc1 = GraphConvolution(nfeat, 2*nhid, num_sample=1): stdv = 1/sqrt(out_features)
        stdv1 = 1.0 / math.sqrt(2 * nhid)
        self.w1 = jax.random.uniform(k1, (nfeat, 2 * nhid), jnp.float32,
                                     minval=-stdv1, maxval=stdv1)
        self.b1 = jax.random.uniform(k2, (1, 2 * nhid), jnp.float32,
                                     minval=-stdv1, maxval=stdv1)
        # gc2 = GraphConvolution(2*nhid, nhid, num_sample)
        stdv2 = 1.0 / math.sqrt(nhid)
        self.w2 = jax.random.uniform(k3, (2 * nhid, nhid), jnp.float32,
                                     minval=-stdv2, maxval=stdv2)
        self.b2 = jax.random.uniform(k4, (num_sample, nhid), jnp.float32,
                                     minval=-stdv2, maxval=stdv2)

    def __call__(self, x, adj, block_b=None):
        return subgraph_encoder_forward(x, adj, self.w1, self.b1, self.w2, self.b2,
                                        block_b=block_b)


def _reference_f32(x, adj, w1, b1, w2, b2):
    # Pure-f32 reference mirroring the PyTorch forward (eval mode).
    s1 = jnp.einsum("bnf,fk->bnk", x, w1)
    h = jnp.maximum(jnp.einsum("bnm,bmk->bnk", adj, s1) + b1[None], 0.0)
    s2 = jnp.einsum("bnk,kh->bnh", h, w2)
    return jnp.einsum("bmn,bmh->bnh", adj, s2) + b2[None]   # adj.transpose(1,2) @ s2


def _reference_bf16(x, adj, w1, b1, w2, b2):
    # Reference mirroring the kernel's bf16 MXU operands / f32 accumulation exactly.
    bf = jnp.bfloat16
    f32 = jnp.float32
    xb, ab, w1b, w2b = x.astype(bf), adj.astype(bf), w1.astype(bf), w2.astype(bf)
    s1 = jnp.einsum("bnf,fk->bnk", xb, w1b, preferred_element_type=f32)
    h = jnp.maximum(jnp.einsum("bnm,bmk->bnk", ab, s1.astype(bf),
                               preferred_element_type=f32) + b1[None], 0.0)
    s2 = jnp.einsum("bnk,kh->bnh", h.astype(bf), w2b, preferred_element_type=f32)
    return jnp.einsum("bmn,bmh->bnh", ab, s2.astype(bf),
                      preferred_element_type=f32) + b2[None]


if __name__ == "__main__":
    key = jax.random.PRNGKey(0)
    kx, ka, kp = jax.random.split(key, 3)

    meta_batch = 64      # large enough that Bt-blocking + pipelining is exercised
    num_sample = 8
    nfeat = 16
    nhid = 32
    dropout = 0.5        # eval mode -> identity

    x = jax.random.normal(kx, (meta_batch, num_sample, nfeat), jnp.float32)
    adj_raw = jax.random.uniform(ka, (meta_batch, num_sample, num_sample), jnp.float32)
    adj = adj_raw / jnp.sum(adj_raw, axis=-1, keepdims=True)  # row-normalized adjacency

    enc = SubGraphEncoderPallas(nfeat, nhid, num_sample, dropout, kp)

    out = jax.block_until_ready(enc(x, adj))
    assert out.shape == (meta_batch, num_sample, nhid)

    # Exact-cast-mirrored reference (tight tolerance)…
    ref_bf = _reference_bf16(x, adj, enc.w1, enc.b1, enc.w2, enc.b2)
    err_bf = jnp.max(jnp.abs(out - ref_bf))
    assert jnp.allclose(out, ref_bf, atol=1e-2, rtol=1e-2), f"bf16-ref max abs err = {err_bf}"

    # …and a looser sanity check against the full-f32 PyTorch-equivalent math.
    ref_f32 = _reference_f32(x, adj, enc.w1, enc.b1, enc.w2, enc.b2)
    err_f32 = jnp.max(jnp.abs(out - ref_f32))
    assert jnp.allclose(out, ref_f32, atol=5e-2, rtol=5e-2), f"f32-ref max abs err = {err_f32}"

    print("KERNEL_OK")
</pallas_src>

<mosaic_0001>
module attributes {stable_mosaic.version = 11 : i64} {
  func.func @_subgraph_encoder_kernel(%arg0: i32, %arg1: memref<128x16xbf16, #tpu.memory_space<vmem>>, %arg2: memref<16x8x8xbf16, #tpu.memory_space<vmem>>, %arg3: memref<16x64xbf16, #tpu.memory_space<vmem>>, %arg4: memref<1x64xf32, #tpu.memory_space<vmem>>, %arg5: memref<64x128xbf16, #tpu.memory_space<vmem>>, %arg6: memref<8x128xf32, #tpu.memory_space<vmem>>, %arg7: memref<16x8x128xf32, #tpu.memory_space<vmem>>) attributes {dimension_semantics = [#tpu.dimension_semantics<parallel>], iteration_bounds = array<i64: 4>, scalar_prefetch = 0 : i64, scratch_operands = 0 : i64, tpu.core_type = #tpu.core_type<tc>, window_params = [{transform_indices = @transform_0, window_bounds = array<i64: 128, 16>}, {transform_indices = @transform_1, window_bounds = array<i64: 16, 8, 8>}, {pipeline_mode = #tpu.pipeline_mode<synchronous>, transform_indices = @transform_2, window_bounds = array<i64: 16, 64>}, {pipeline_mode = #tpu.pipeline_mode<synchronous>, transform_indices = @transform_3, window_bounds = array<i64: 1, 64>}, {pipeline_mode = #tpu.pipeline_mode<synchronous>, transform_indices = @transform_4, window_bounds = array<i64: 64, 128>}, {pipeline_mode = #tpu.pipeline_mode<synchronous>, transform_indices = @transform_5, window_bounds = array<i64: 8, 128>}, {transform_indices = @transform_6, window_bounds = array<i64: 16, 8, 128>}]} {
    %c0 = arith.constant 0 : index
    %c0_0 = arith.constant 0 : index
    %0 = vector.load %arg1[%c0, %c0_0] : memref<128x16xbf16, #tpu.memory_space<vmem>>, vector<128x16xbf16>
    %c0_1 = arith.constant 0 : index
    %c0_2 = arith.constant 0 : index
    %c0_3 = arith.constant 0 : index
    %1 = vector.load %arg2[%c0_1, %c0_2, %c0_3] : memref<16x8x8xbf16, #tpu.memory_space<vmem>>, vector<16x8x8xbf16>
    %c0_4 = arith.constant 0 : index
    %c0_5 = arith.constant 0 : index
    %2 = vector.load %arg3[%c0_4, %c0_5] : memref<16x64xbf16, #tpu.memory_space<vmem>>, vector<16x64xbf16>
    %cst = arith.constant dense<0.000000e+00> : vector<128x64xf32>
    %3 = tpu.matmul %0, %2, %cst {dimension_numbers = #tpu.dot_dimension_numbers<[1], [0], [0], [1], [0, 0, 1, 1], [], []>} : vector<128x16xbf16>, vector<16x64xbf16>, vector<128x64xf32> -> vector<128x64xf32>
    %4 = vector.shape_cast %3 : vector<128x64xf32> to vector<16x8x64xf32>
    %5 = arith.truncf %4 : vector<16x8x64xf32> to vector<16x8x64xbf16>
    %cst_6 = arith.constant dense<0.000000e+00> : vector<16x8x64xf32>
    %6 = tpu.matmul %1, %5, %cst_6 {dimension_numbers = #tpu.dot_dimension_numbers<[2], [1], [1], [2], [0, 0, 0, 1, 1, 2], [0], [0]>} : vector<16x8x8xbf16>, vector<16x8x64xbf16>, vector<16x8x64xf32> -> vector<16x8x64xf32>
    %c0_7 = arith.constant 0 : index
    %c0_8 = arith.constant 0 : index
    %7 = vector.load %arg4[%c0_7, %c0_8] : memref<1x64xf32, #tpu.memory_space<vmem>>, vector<1x64xf32>
    %8 = vector.shape_cast %7 : vector<1x64xf32> to vector<1x1x64xf32>
    %9 = vector.broadcast %8 : vector<1x1x64xf32> to vector<16x8x64xf32>
    %10 = arith.addf %6, %9 : vector<16x8x64xf32>
    %cst_9 = arith.constant 0.000000e+00 : f32
    %11 = vector.broadcast %cst_9 : f32 to vector<16x8x64xf32>
    %12 = arith.maximumf %10, %11 : vector<16x8x64xf32>
    %13 = vector.shape_cast %12 : vector<16x8x64xf32> to vector<128x64xf32>
    %14 = arith.truncf %13 : vector<128x64xf32> to vector<128x64xbf16>
    %c0_10 = arith.constant 0 : index
    %c0_11 = arith.constant 0 : index
    %15 = vector.load %arg5[%c0_10, %c0_11] : memref<64x128xbf16, #tpu.memory_space<vmem>>, vector<64x128xbf16>
    %cst_12 = arith.constant dense<0.000000e+00> : vector<128x128xf32>
    %16 = tpu.matmul %14, %15, %cst_12 {dimension_numbers = #tpu.dot_dimension_numbers<[1], [0], [0], [1], [0, 0, 1, 1], [], []>} : vector<128x64xbf16>, vector<64x128xbf16>, vector<128x128xf32> -> vector<128x128xf32>
    %17 = vector.shape_cast %16 : vector<128x128xf32> to vector<16x8x128xf32>
    %18 = arith.truncf %17 : vector<16x8x128xf32> to vector<16x8x128xbf16>
    %cst_13 = arith.constant dense<0.000000e+00> : vector<16x8x128xf32>
    %19 = tpu.matmul %1, %18, %cst_13 {dimension_numbers = #tpu.dot_dimension_numbers<[1], [1], [2], [2], [0, 0, 0, 2, 1, 2], [0], [0]>} : vector<16x8x8xbf16>, vector<16x8x128xbf16>, vector<16x8x128xf32> -> vector<16x8x128xf32>
    %c0_14 = arith.constant 0 : index
    %c0_15 = arith.constant 0 : index
    %20 = vector.load %arg6[%c0_14, %c0_15] : memref<8x128xf32, #tpu.memory_space<vmem>>, vector<8x128xf32>
    %21 = vector.shape_cast %20 : vector<8x128xf32> to vector<1x8x128xf32>
    %22 = vector.broadcast %21 : vector<1x8x128xf32> to vector<16x8x128xf32>
    %23 = arith.addf %19, %22 : vector<16x8x128xf32>
    %c0_16 = arith.constant 0 : index
    %c0_17 = arith.constant 0 : index
    %c0_18 = arith.constant 0 : index
    %24 = vector.load %arg7[%c0_16, %c0_17, %c0_18] : memref<16x8x128xf32, #tpu.memory_space<vmem>>, vector<16x8x128xf32>
    tpu.vector_store %arg7[%c0_16, %c0_17, %c0_18], %23 {strides = array<i32>} : memref<16x8x128xf32, #tpu.memory_space<vmem>>, vector<16x8x128xf32>,
    return
  }
  func.func @transform_0(%arg0: i32) -> (i32, i32) {
    %c0_i32 = arith.constant 0 : i32
    %c0_i32_0 = arith.constant 0 : i32
    return %arg0, %c0_i32 : i32, i32
  }
  func.func @transform_1(%arg0: i32) -> (i32, i32, i32) {
    %c0_i32 = arith.constant 0 : i32
    %c0_i32_0 = arith.constant 0 : i32
    %c0_i32_1 = arith.constant 0 : i32
    return %arg0, %c0_i32, %c0_i32_0 : i32, i32, i32
  }
  func.func @transform_2(%arg0: i32) -> (i32, i32) {
    %c0_i32 = arith.constant 0 : i32
    %c0_i32_0 = arith.constant 0 : i32
    %c0_i32_1 = arith.constant 0 : i32
    return %c0_i32, %c0_i32_0 : i32, i32
  }
  func.func @transform_3(%arg0: i32) -> (i32, i32) {
    %c0_i32 = arith.constant 0 : i32
    %c0_i32_0 = arith.constant 0 : i32
    %c0_i32_1 = arith.constant 0 : i32
    return %c0_i32, %c0_i32_0 : i32, i32
  }
  func.func @transform_4(%arg0: i32) -> (i32, i32) {
    %c0_i32 = arith.constant 0 : i32
    %c0_i32_0 = arith.constant 0 : i32
    %c0_i32_1 = arith.constant 0 : i32
    return %c0_i32, %c0_i32_0 : i32, i32
  }
  func.func @transform_5(%arg0: i32) -> (i32, i32) {
    %c0_i32 = arith.constant 0 : i32
    %c0_i32_0 = arith.constant 0 : i32
    %c0_i32_1 = arith.constant 0 : i32
    return %c0_i32, %c0_i32_0 : i32, i32
  }
  func.func @transform_6(%arg0: i32) -> (i32, i32, i32) {
    %c0_i32 = arith.constant 0 : i32
    %c0_i32_0 = arith.constant 0 : i32
    %c0_i32_1 = arith.constant 0 : i32
    return %arg0, %c0_i32, %c0_i32_0 : i32, i32, i32
  }
}

</mosaic_0001>

<llo_original>
// kernel: tpu_custom_call.1
$region0: #{tpu_custom_call.1}
  #allocation0 [shape = 'u32[]', space=smem, size = 0x4, offset = 0x4, fixed_abs, tag = 'smem constant byte address 0x4 - core index']
  #allocation1 [shape = 'u32[144,128]{1,0:T(1,128)}', space=vmem, size = 0x12000, scoped, tag = 'internal scratch']
  %s0 = inlined_call_operand.vmem [shape: bf16[512,16], index: 0, kind: input, shape index: {}]
  %s1 = inlined_call_operand.vmem [shape: bf16[64,8,8], index: 1, kind: input, shape index: {}]
  %s2 = inlined_call_operand.vmem [shape: bf16[16,64], index: 2, kind: input, shape index: {}]
  %s3 = inlined_call_operand.vmem [shape: f32[1,64], index: 3, kind: input, shape index: {}]
  %s4 = inlined_call_operand.vmem [shape: bf16[64,128], index: 4, kind: input, shape index: {}]
  %s5 = inlined_call_operand.vmem [shape: f32[8,128], index: 5, kind: input, shape index: {}]
  %s6 = inlined_call_operand.hbm [shape: f32[64,8,128], index: 6, kind: output, shape index: {}]
  %s7 = sld [smem:[#allocation0]]
  $region57: #{tpu_custom_call.1} parent=0
    _
  %s9 = ssub.s32 1, %s7
  %s10 = scalar_select 0, %s9, %s7
  $region1: #{tpu_custom_call.1} parent=0
    #allocation2 [shape = 'u8[131072]{0}', space=vmem, size = 0x20000, scoped, tag = 'output window, operand 0']
    #allocation3 [shape = 's32[2]{0}', space=sflag, size = 0x8, scoped, tag = 'scoped memory for tpu_custom_call.1']
    %11 = vsyncpa [#allocation3], 0
    %s12 = scalar_lea.sflag [#allocation3], 1
    %13 = vsyncpa %s12, 0
    loop: start=0, step=1, limit=6
    $region2: #{tpu_custom_call.1} parent=1 // loop_pre_header
      _
    $region3: #{tpu_custom_call.1} parent=1 // loop_header
      %s15 = sphi 0, %s19
      %p16 = scmp.ge.s32.totalorder %s15, 6
      %s25 = sphi 0, %s27
      %s28 = sphi 0, %s25
      %s29 = sphi 0, %s28
      %s45 = sphi 0, %s29
      %s51 = sphi 0, %s53
      %s54 = sphi 0, %s51
      %s55 = sphi 0, %s54
      %s71 = sphi 0, %s55
      %s75 = sphi 0, %s75
      %s77 = sphi 0, %s75
      %s78 = sphi 0, %s77
      %s92 = sphi 0, %s78
      %s96 = sphi 0, %s96
      %s98 = sphi 0, %s96
      %s99 = sphi 0, %s98
      %s113 = sphi 0, %s99
      %s117 = sphi 0, %s117
      %s119 = sphi 0, %s117
      %s120 = sphi 0, %s119
      %s134 = sphi 0, %s120
      %s138 = sphi 0, %s138
      %s140 = sphi 0, %s138
      %s141 = sphi 0, %s140
      %s155 = sphi 0, %s141
      %s161 = sphi 0, %s163
      %s164 = sphi 0, %s161
      %s165 = sphi 0, %s164
      %s181 = sphi 0, %s165
    $region4: #{tpu_custom_call.1} parent=1 // loop_header_branch
      %18 = sbr.rel (%p16) target = $region8
    $region5: #{tpu_custom_call.1} parent=1 // loop_body
      %s20 = ssub.s32 %s15, 1
      %s21 = ssub.s32 %s15, 2
      %s22 = sadd.s32 %s15, 1
      %s23 = ssub.s32 %s15, %s22
      %p24 = scmp.eq.s32.totalorder %s23, 0
      %s26 = sadd.s32 %s25, 1
      %s27 = scalar_select %p24, %s25, %s26
      %p30 = pneg %p24
      %p31 = scmp.eq.s32.totalorder %s15, 3
      %p32 = por %p30, %p31
      %p33 = scmp.ne.s32.totalorder %s25, %s28
      %p34 = scmp.eq.s32.totalorder %s15, 0
      %p35 = por %p33, %p34
      %p36 = scmp.ne.s32.totalorder %s25, %s28
      %p37 = scmp.eq.s32.totalorder %s20, 3
      %p38 = por %p36, %p37
      %p39 = scmp.ne.s32.totalorder %s28, %s29
      %p40 = scmp.eq.s32.totalorder %s20, 0
      %p41 = por %p39, %p40
      %p42 = scmp.ne.s32.totalorder %s28, %s29
      %p43 = scmp.eq.s32.totalorder %s21, 3
      %p44 = por %p42, %p43
      %p46 = scmp.ne.s32.totalorder %s29, %s45
      %p47 = scmp.eq.s32.totalorder %s21, 0
      %p48 = por %p46, %p47
      %s49 = ssub.s32 %s15, %s22
      %p50 = scmp.eq.s32.totalorder %s49, 0
      %s52 = sadd.s32 %s51, 1
      %s53 = scalar_select %p50, %s51, %s52
      %p56 = pneg %p50
      %p57 = scmp.eq.s32.totalorder %s15, 3
      %p58 = por %p56, %p57
      %p59 = scmp.ne.s32.totalorder %s51, %s54
      %p60 = scmp.eq.s32.totalorder %s15, 0
      %p61 = por %p59, %p60
      %p62 = scmp.ne.s32.totalorder %s51, %s54
      %p63 = scmp.eq.s32.totalorder %s20, 3
      %p64 = por %p62, %p63
      %p65 = scmp.ne.s32.totalorder %s54, %s55
      %p66 = scmp.eq.s32.totalorder %s20, 0
      %p67 = por %p65, %p66
      %p68 = scmp.ne.s32.totalorder %s54, %s55
      %p69 = scmp.eq.s32.totalorder %s21, 3
      %p70 = por %p68, %p69
      %p72 = scmp.ne.s32.totalorder %s55, %s71
      %p73 = scmp.eq.s32.totalorder %s21, 0
      %p74 = por %p72, %p73
      %s76 = sadd.s32 %s75, 1
      %p79 = scmp.eq.s32.totalorder %s15, 3
      %p80 = scmp.ne.s32.totalorder %s75, %s77
      %p81 = scmp.eq.s32.totalorder %s15, 0
      %p82 = por %p80, %p81
      %p83 = scmp.ne.s32.totalorder %s75, %s77
      %p84 = scmp.eq.s32.totalorder %s20, 3
      %p85 = por %p83, %p84
      %p86 = scmp.ne.s32.totalorder %s77, %s78
      %p87 = scmp.eq.s32.totalorder %s20, 0
      %p88 = por %p86, %p87
      %p89 = scmp.ne.s32.totalorder %s77, %s78
      %p90 = scmp.eq.s32.totalorder %s21, 3
      %p91 = por %p89, %p90
      %p93 = scmp.ne.s32.totalorder %s78, %s92
      %p94 = scmp.eq.s32.totalorder %s21, 0
      %p95 = por %p93, %p94
      %s97 = sadd.s32 %s96, 1
      %p100 = scmp.eq.s32.totalorder %s15, 3
      %p101 = scmp.ne.s32.totalorder %s96, %s98
      %p102 = scmp.eq.s32.totalorder %s15, 0
      %p103 = por %p101, %p102
      %p104 = scmp.ne.s32.totalorder %s96, %s98
      %p105 = scmp.eq.s32.totalorder %s20, 3
      %p106 = por %p104, %p105
      %p107 = scmp.ne.s32.totalorder %s98, %s99
      %p108 = scmp.eq.s32.totalorder %s20, 0
      %p109 = por %p107, %p108
      %p110 = scmp.ne.s32.totalorder %s98, %s99
      %p111 = scmp.eq.s32.totalorder %s21, 3
      %p112 = por %p110, %p111
      %p114 = scmp.ne.s32.totalorder %s99, %s113
      %p115 = scmp.eq.s32.totalorder %s21, 0
      %p116 = por %p114, %p115
      %s118 = sadd.s32 %s117, 1
      %p121 = scmp.eq.s32.totalorder %s15, 3
      %p122 = scmp.ne.s32.totalorder %s117, %s119
      %p123 = scmp.eq.s32.totalorder %s15, 0
      %p124 = por %p122, %p123
      %p125 = scmp.ne.s32.totalorder %s117, %s119
      %p126 = scmp.eq.s32.totalorder %s20, 3
      %p127 = por %p125, %p126
      %p128 = scmp.ne.s32.totalorder %s119, %s120
      %p129 = scmp.eq.s32.totalorder %s20, 0
      %p130 = por %p128, %p129
      %p131 = scmp.ne.s32.totalorder %s119, %s120
      %p132 = scmp.eq.s32.totalorder %s21, 3
      %p133 = por %p131, %p132
      %p135 = scmp.ne.s32.totalorder %s120, %s134
      %p136 = scmp.eq.s32.totalorder %s21, 0
      %p137 = por %p135, %p136
      %s139 = sadd.s32 %s138, 1
      %p142 = scmp.eq.s32.totalorder %s15, 3
      %p143 = scmp.ne.s32.totalorder %s138, %s140
      %p144 = scmp.eq.s32.totalorder %s15, 0
      %p145 = por %p143, %p144
      %p146 = scmp.ne.s32.totalorder %s138, %s140
      %p147 = scmp.eq.s32.totalorder %s20, 3
      %p148 = por %p146, %p147
      %p149 = scmp.ne.s32.totalorder %s140, %s141
      %p150 = scmp.eq.s32.totalorder %s20, 0
      %p151 = por %p149, %p150
      %p152 = scmp.ne.s32.totalorder %s140, %s141
      %p153 = scmp.eq.s32.totalorder %s21, 3
      %p154 = por %p152, %p153
      %p156 = scmp.ne.s32.totalorder %s141, %s155
      %p157 = scmp.eq.s32.totalorder %s21, 0
      %p158 = por %p156, %p157
      %s159 = ssub.s32 %s15, %s22
      %p160 = scmp.eq.s32.totalorder %s159, 0
      %s162 = sadd.s32 %s161, 1
      %s163 = scalar_select %p160, %s161, %s162
      %p166 = pneg %p160
      %p167 = scmp.eq.s32.totalorder %s15, 3
      %p168 = por %p166, %p167
      %p169 = scmp.ne.s32.totalorder %s161, %s164
      %p170 = scmp.eq.s32.totalorder %s15, 0
      %p171 = por %p169, %p170
      %p172 = scmp.ne.s32.totalorder %s161, %s164
      %p173 = scmp.eq.s32.totalorder %s20, 3
      %p174 = por %p172, %p173
      %p175 = scmp.ne.s32.totalorder %s164, %s165
      %p176 = scmp.eq.s32.totalorder %s20, 0
      %p177 = por %p175, %p176
      %p178 = scmp.ne.s32.totalorder %s164, %s165
      %p179 = scmp.eq.s32.totalorder %s21, 3
      %p180 = por %p178, %p179
      %p182 = scmp.ne.s32.totalorder %s165, %s181
      %p183 = scmp.eq.s32.totalorder %s21, 0
      %p184 = por %p182, %p183
      %p185 = scmp.le.s32.totalorder 1, %s15
      %p186 = scmp.lt.s32.totalorder %s15, 5
      %p187 = pnand %p185, %p186
      %p188 = pneg %p187
      // Predicated region
      $region9: #{tpu_custom_call.1} parent=5 // pred_check
        _
      $region10: #{tpu_custom_call.1} parent=5 // pred_check_branch
        %190 = sbr.rel (%p187) target = $region12
      $region11: #{tpu_custom_call.1} parent=5 // pred_region
        %s191 = ssub.s32 %s15, 1
        // Predicated region
        $region13: #{tpu_custom_call.1} parent=11 // pred_check
          %p192 = pneg %p88
        $region14: #{tpu_custom_call.1} parent=11 // pred_check_branch
          %194 = sbr.rel (%p192) target = $region16
        $region15: #{tpu_custom_call.1} parent=11 // pred_region
          _
        $region16: #{tpu_custom_call.1} parent=11 // pred_fallthru
          _
        // Predicated region
        $region17: #{tpu_custom_call.1} parent=11 // pred_check
          %p195 = pneg %p109
        $region18: #{tpu_custom_call.1} parent=11 // pred_check_branch
          %197 = sbr.rel (%p195) target = $region20
        $region19: #{tpu_custom_call.1} parent=11 // pred_region
          _
        $region20: #{tpu_custom_call.1} parent=11 // pred_fallthru
          _
        // Predicated region
        $region21: #{tpu_custom_call.1} parent=11 // pred_check
          %p198 = pneg %p130
        $region22: #{tpu_custom_call.1} parent=11 // pred_check_branch
          %200 = sbr.rel (%p198) target = $region24
        $region23: #{tpu_custom_call.1} parent=11 // pred_region
          _
        $region24: #{tpu_custom_call.1} parent=11 // pred_fallthru
          _
        // Predicated region
        $region25: #{tpu_custom_call.1} parent=11 // pred_check
          %p201 = pneg %p151
        $region26: #{tpu_custom_call.1} parent=11 // pred_check_branch
          %203 = sbr.rel (%p201) target = $region28
        $region27: #{tpu_custom_call.1} parent=11 // pred_region
          _
        $region28: #{tpu_custom_call.1} parent=11 // pred_fallthru
          _
      $region12: #{tpu_custom_call.1} parent=5 // pred_fallthru
        _
      %p204 = scmp.lt.s32.totalorder %s15, 4
      // Predicated region
      $region29: #{tpu_custom_call.1} parent=5 // pred_check
        %p205 = pneg %p204
      $region30: #{tpu_custom_call.1} parent=5 // pred_check_branch
        %207 = sbr.rel (%p205) target = $region32
      $region31: #{tpu_custom_call.1} parent=5 // pred_region
        // Predicated region
        $region33: #{tpu_custom_call.1} parent=31 // pred_check
          %p208 = pneg %p35
        $region34: #{tpu_custom_call.1} parent=31 // pred_check_branch
          %210 = sbr.rel (%p208) target = $region36
        $region35: #{tpu_custom_call.1} parent=31 // pred_region
          %s211 = smul.u32 16, %s15
          %p212 = scmp.lt.s32.totalorder %s211, 63
          %s213 = scalar_select %p212, %s211, 63
          %s214 = smul.addr %s213, 4
          %s215 = scalar_lea.vmem %s0, %s214
          %s216 = smul.u32 16, %s15
        $region36: #{tpu_custom_call.1} parent=31 // pred_fallthru
          _
        // Predicated region
        $region37: #{tpu_custom_call.1} parent=31 // pred_check
          %p217 = pneg %p61
        $region38: #{tpu_custom_call.1} parent=31 // pred_check_branch
          %219 = sbr.rel (%p217) target = $region40
        $region39: #{tpu_custom_call.1} parent=31 // pred_region
          %s220 = smul.u32 16, %s15
          %p221 = scmp.lt.s32.totalorder %s220, 63
          %s222 = scalar_select %p221, %s220, 63
          %s223 = smul.addr %s222, 4
          %s224 = scalar_lea.vmem %s1, %s223
          %s225 = smul.u32 16, %s15
        $region40: #{tpu_custom_call.1} parent=31 // pred_fallthru
          _
      $region32: #{tpu_custom_call.1} parent=5 // pred_fallthru
        _
      %p226 = scmp.le.s32.totalorder 1, %s15
      %p227 = scmp.lt.s32.totalorder %s15, 5
      %p228 = pnand %p226, %p227
      %p229 = pneg %p228
      // Predicated region
      $region41: #{tpu_custom_call.1} parent=5 // pred_check
        _
      $region42: #{tpu_custom_call.1} parent=5 // pred_check_branch
        %231 = sbr.rel (%p228) target = $region44
      $region43: #{tpu_custom_call.1} parent=5 // pred_region
        %s232 = ssub.s32 %s15, 1
        %s233 = smul.u32 16, %s20
        %p234 = scmp.lt.s32.totalorder %s233, 63
        %s235 = scalar_select %p234, %s233, 63
        %s236 = smul.addr %s235, 4
        %s237 = scalar_lea.vmem %s0, %s236
        %p238 = pneg %p41
        %p239 = pneg %p38
        %s240 = smul.u32 16, %s20
        %p241 = scmp.lt.s32.totalorder %s240, 63
        %s242 = scalar_select %p241, %s240, 63
        %s243 = smul.addr %s242, 4
        %s244 = scalar_lea.vmem %s1, %s243
        %p245 = pneg %p67
        %p246 = pneg %p64
        %p247 = pneg %p88
        %p248 = pneg %p85
        %p249 = pneg %p109
        %p250 = pneg %p106
        %p251 = pneg %p130
        %p252 = pneg %p127
        %p253 = pneg %p151
        %p254 = pneg %p148
        %p255 = pneg %p177
        %p256 = pneg %p174
        %s257 = sand.u32 %s164, 1
        %s258 = scalar_lea.sflag [#allocation3], %s257
        %s259 = sand.u32 %s164, 1
        %s260 = smul.addr %s259, 128
        %s261 = scalar_lea.vmem [#allocation2], %s260
        %s262 = smul.u32 16, %s20
        %p263 = scmp.lt.s32.totalorder %s262, 63
        %s264 = scalar_select %p263, %s262, 63
        %s265 = smul.addr %s264, 4
        %s266 = scalar_lea.vmem %s0, %s265
        %s267 = smul.u32 16, %s20
        %s268 = smul.u32 16, %s20
        %p269 = scmp.lt.s32.totalorder %s268, 63
        %s270 = scalar_select %p269, %s268, 63
        %s271 = smul.addr %s270, 4
        %s272 = scalar_lea.vmem %s1, %s271
        %s273 = smul.u32 16, %s20
        %s274 = smul.u32 16, %s20
        %v276 = vld [vmem:[%s266] sm:$0xf]
        %v277 = vld [vmem:[%s266 + $0x4] sm:$0xf]
        %v278 = vld [vmem:[%s266 + $0x8] sm:$0xf]
        %v279 = vld [vmem:[%s266 + $0xc] sm:$0xf]
        %v280 = vld [vmem:[%s266 + $0x10] sm:$0xf]
        %v281 = vld [vmem:[%s266 + $0x14] sm:$0xf]
        %v282 = vld [vmem:[%s266 + $0x18] sm:$0xf]
        %v283 = vld [vmem:[%s266 + $0x1c] sm:$0xf]
        %v284 = vld [vmem:[%s266 + $0x20] sm:$0xf]
        %v285 = vld [vmem:[%s266 + $0x24] sm:$0xf]
        %v286 = vld [vmem:[%s266 + $0x28] sm:$0xf]
        %v287 = vld [vmem:[%s266 + $0x2c] sm:$0xf]
        %v288 = vld [vmem:[%s266 + $0x30] sm:$0xf]
        %v289 = vld [vmem:[%s266 + $0x34] sm:$0xf]
        %v290 = vld [vmem:[%s266 + $0x38] sm:$0xf]
        %v291 = vld [vmem:[%s266 + $0x3c] sm:$0xf]
        %v292 = vld [vmem:[%s272] sm:$0xf]
        %v293 = vld [vmem:[%s272 + $0x4] sm:$0xf]
        %v294 = vld [vmem:[%s272 + $0x8] sm:$0xf]
        %v295 = vld [vmem:[%s272 + $0xc] sm:$0xf]
        %v296 = vld [vmem:[%s272 + $0x10] sm:$0xf]
        %v297 = vld [vmem:[%s272 + $0x14] sm:$0xf]
        %v298 = vld [vmem:[%s272 + $0x18] sm:$0xf]
        %v299 = vld [vmem:[%s272 + $0x1c] sm:$0xf]
        %v300 = vld [vmem:[%s272 + $0x20] sm:$0xf]
        %v301 = vld [vmem:[%s272 + $0x24] sm:$0xf]
        %v302 = vld [vmem:[%s272 + $0x28] sm:$0xf]
        %v303 = vld [vmem:[%s272 + $0x2c] sm:$0xf]
        %v304 = vld [vmem:[%s272 + $0x30] sm:$0xf]
        %v305 = vld [vmem:[%s272 + $0x34] sm:$0xf]
        %v306 = vld [vmem:[%s272 + $0x38] sm:$0xf]
        %v307 = vld [vmem:[%s272 + $0x3c] sm:$0xf]
        %v308 = vld [vmem:[%s2] sm:$0xf]
        %v309 = vld [vmem:[%s2 + $0x4] sm:$0xf]
        %v326 = vunpack.c.l.b16 %v276
        %v327 = vunpack.c.l.b16 %v277
        %v328 = vunpack.c.l.b16 %v278
        %v329 = vunpack.c.l.b16 %v279
        %v330 = vunpack.c.l.b16 %v280
        %v331 = vunpack.c.l.b16 %v281
        %v332 = vunpack.c.l.b16 %v282
        %v333 = vunpack.c.l.b16 %v283
        %v334 = vunpack.c.l.b16 %v284
        %v335 = vunpack.c.l.b16 %v285
        %v336 = vunpack.c.l.b16 %v286
        %v337 = vunpack.c.l.b16 %v287
        %v338 = vunpack.c.l.b16 %v288
        %v339 = vunpack.c.l.b16 %v289
        %v340 = vunpack.c.l.b16 %v290
        %v341 = vunpack.c.l.b16 %v291
        %v342 = vpack.c.b16 %v327, %v326
        %v343 = vpack.c.b16 %v329, %v328
        %v344 = vpack.c.b16 %v331, %v330
        %v345 = vpack.c.b16 %v333, %v332
        %v346 = vpack.c.b16 %v335, %v334
        %v347 = vpack.c.b16 %v337, %v336
        %v348 = vpack.c.b16 %v339, %v338
        %v349 = vpack.c.b16 %v341, %v340
        %v352 = vunpack.c.l.b16 %v308
        %v353 = vunpack.c.l.b16 %v309
        %v354 = vpack.c.b16 %v353, %v352
        %vm356 = vcmask 130048
        %v358 = vsel %vm356, %v342, 0
        %v361 = vsel %vm356, %v343, 0
        %v364 = vsel %vm356, %v344, 0
        %v367 = vsel %vm356, %v345, 0
        %v370 = vsel %vm356, %v346, 0
        %v373 = vsel %vm356, %v347, 0
        %v376 = vsel %vm356, %v348, 0
        %v379 = vsel %vm356, %v349, 0
        %381 = vmatprep.subr.bf16.mxu0 0
        %382 = vmatpush1.bf16.msra.mxu0 %v354
        %383 = vmatprep.subr.bf16.mxu0 0
        %384 = vmatpush1.bf16.msra.mxu0 0
        %385 = vmatprep.subr.bf16.mxu0 0
        %386 = vmatpush1.bf16.msra.mxu0 0
        %387 = vmatprep.subr.bf16.mxu0 0
        %388 = vmatpush1.bf16.msra.mxu0 0
        %389 = vmatprep.subr.bf16.mxu0 0
        %390 = vmatpush1.bf16.msra.mxu0 0
        %391 = vmatprep.subr.bf16.mxu0 0
        %392 = vmatpush1.bf16.msra.mxu0 0
        %393 = vmatprep.subr.bf16.mxu0 0
        %394 = vmatpush1.bf16.msra.mxu0 0
        %395 = vmatprep.subr.bf16.mxu0 0
        %396 = vmatpush1.bf16.msra.mxu0 0
        %397 = vmatprep.subr.bf16.mxu0 0
        %398 = vmatpush1.bf16.msra.mxu0 0
        %399 = vmatprep.subr.bf16.mxu0 0
        %400 = vmatpush1.bf16.msra.mxu0 0
        %401 = vmatprep.subr.bf16.mxu0 0
        %402 = vmatpush1.bf16.msra.mxu0 0
        %403 = vmatprep.subr.bf16.mxu0 0
        %404 = vmatpush1.bf16.msra.mxu0 0
        %405 = vmatprep.subr.bf16.mxu0 0
        %406 = vmatpush1.bf16.msra.mxu0 0
        %407 = vmatprep.subr.bf16.mxu0 0
        %408 = vmatpush1.bf16.msra.mxu0 0
        %409 = vmatprep.subr.bf16.mxu0 0
        %410 = vmatpush1.bf16.msra.mxu0 0
        %411 = vmatprep.subr.bf16.mxu0 0
        %412 = vmatpush1.bf16.msra.mxu0 0
        %413 = vmatprep.mubr.bf16.mxu0 0
        %414 = vmatmul.mubr.bf16.gmra.mrb[0].mxu0 %v358
        %v415 = vpop.f32.mrb[0].mxu0
        %v416 = vadd.f32 0.0, %v415
        %v417 = vpop.f32.mrb[0].mxu0
        %v418 = vpop.f32.mrb[0].mxu0
        %v419 = vadd.f32 0.0, %v418
        %v420 = vpop.f32.mrb[0].mxu0
        %421 = vmatprep.mubr.bf16.mxu0 0
        %422 = vmatmul.mubr.bf16.gmra.mrb[0].mxu0 %v361
        %v423 = vpop.f32.mrb[0].mxu0
        %v424 = vadd.f32 0.0, %v423
        %v425 = vpop.f32.mrb[0].mxu0
        %v426 = vpop.f32.mrb[0].mxu0
        %v427 = vadd.f32 0.0, %v426
        %v428 = vpop.f32.mrb[0].mxu0
        %429 = vmatprep.mubr.bf16.mxu0 0
        %430 = vmatmul.mubr.bf16.gmra.mrb[0].mxu0 %v364
        %v431 = vpop.f32.mrb[0].mxu0
        %v432 = vadd.f32 0.0, %v431
        %v433 = vpop.f32.mrb[0].mxu0
        %v434 = vpop.f32.mrb[0].mxu0
        %v435 = vadd.f32 0.0, %v434
        %v436 = vpop.f32.mrb[0].mxu0
        %437 = vmatprep.mubr.bf16.mxu0 0
        %438 = vmatmul.mubr.bf16.gmra.mrb[0].mxu0 %v367
        %v439 = vpop.f32.mrb[0].mxu0
        %v440 = vadd.f32 0.0, %v439
        %v441 = vpop.f32.mrb[0].mxu0
        %v442 = vpop.f32.mrb[0].mxu0
        %v443 = vadd.f32 0.0, %v442
        %v444 = vpop.f32.mrb[0].mxu0
        %445 = vmatprep.mubr.bf16.mxu0 0
        %446 = vmatmul.mubr.bf16.gmra.mrb[0].mxu0 %v370
        %v447 = vpop.f32.mrb[0].mxu0
        %v448 = vadd.f32 0.0, %v447
        %v449 = vpop.f32.mrb[0].mxu0
        %v450 = vpop.f32.mrb[0].mxu0
        %v451 = vadd.f32 0.0, %v450
        %v452 = vpop.f32.mrb[0].mxu0
        %453 = vmatprep.mubr.bf16.mxu0 0
        %454 = vmatmul.mubr.bf16.gmra.mrb[0].mxu0 %v373
        %v455 = vpop.f32.mrb[0].mxu0
        %v456 = vadd.f32 0.0, %v455
        %v457 = vpop.f32.mrb[0].mxu0
        %v458 = vpop.f32.mrb[0].mxu0
        %v459 = vadd.f32 0.0, %v458
        %v460 = vpop.f32.mrb[0].mxu0
        %461 = vmatprep.mubr.bf16.mxu0 0
        %462 = vmatmul.mubr.bf16.gmra.mrb[0].mxu0 %v376
        %v463 = vpop.f32.mrb[0].mxu0
        %v464 = vadd.f32 0.0, %v463
        %v465 = vpop.f32.mrb[0].mxu0
        %v466 = vpop.f32.mrb[0].mxu0
        %v467 = vadd.f32 0.0, %v466
        %v468 = vpop.f32.mrb[0].mxu0
        %469 = vmatprep.mubr.bf16.mxu0 0
        %470 = vmatmul.mubr.bf16.gmra.mrb[0].mxu0 %v379
        %v471 = vpop.f32.mrb[0].mxu0
        %v472 = vadd.f32 0.0, %v471
        %v473 = vpop.f32.mrb[0].mxu0
        %v474 = vpop.f32.mrb[0].mxu0
        %v475 = vadd.f32 0.0, %v474
        %v476 = vpop.f32.mrb[0].mxu0
        %477 = vdwg.mxu0
        %v478 = vpack.c.bf16 %v416, %v416
        %v479 = vpack.c.bf16 %v419, %v419
        %v480 = vpack.c.bf16 %v424, %v424
        %v481 = vpack.c.bf16 %v427, %v427
        %v482 = vpack.c.bf16 %v432, %v432
        %v483 = vpack.c.bf16 %v435, %v435
        %v484 = vpack.c.bf16 %v440, %v440
        %v485 = vpack.c.bf16 %v443, %v443
        %v486 = vpack.c.bf16 %v448, %v448
        %v487 = vpack.c.bf16 %v451, %v451
        %v488 = vpack.c.bf16 %v456, %v456
        %v489 = vpack.c.bf16 %v459, %v459
        %v490 = vpack.c.bf16 %v464, %v464
        %v491 = vpack.c.bf16 %v467, %v467
        %v492 = vpack.c.bf16 %v472, %v472
        %v493 = vpack.c.bf16 %v475, %v475
        %v494 = vld [vmem:[%s3] sm:$0x1]
        %v496 = vlaneseq
        %v497 = vshrl.u32 %v496, 7
        %v498 = vsub.s32 0, %v497
        %v499 = vrot.slane %v494, %v498
        %vm501 = vcmask 64512
        %v503 = vsel %vm501, %v292, 0
        %vm505 = vcmask 1043456
        %v507 = vsel %vm505, %v478, 0
        %509 = vmatprep.subr.bf16.mxu0 0
        %510 = vmatpush1.bf16.msra.mxu0 %v507
        %511 = vmatprep.subr.bf16.mxu0 0
        %512 = vmatpush1.bf16.msra.mxu0 0
        %513 = vmatprep.subr.bf16.mxu0 0
        %514 = vmatpush1.bf16.msra.mxu0 0
        %515 = vmatprep.subr.bf16.mxu0 0
        %516 = vmatpush1.bf16.msra.mxu0 0
        %517 = vmatprep.subr.bf16.mxu0 0
        %518 = vmatpush1.bf16.msra.mxu0 0
        %519 = vmatprep.subr.bf16.mxu0 0
        %520 = vmatpush1.bf16.msra.mxu0 0
        %521 = vmatprep.subr.bf16.mxu0 0
        %522 = vmatpush1.bf16.msra.mxu0 0
        %523 = vmatprep.subr.bf16.mxu0 0
        %524 = vmatpush1.bf16.msra.mxu0 0
        %525 = vmatprep.subr.bf16.mxu0 0
        %526 = vmatpush1.bf16.msra.mxu0 0
        %527 = vmatprep.subr.bf16.mxu0 0
        %528 = vmatpush1.bf16.msra.mxu0 0
        %529 = vmatprep.subr.bf16.mxu0 0
        %530 = vmatpush1.bf16.msra.mxu0 0
        %531 = vmatprep.subr.bf16.mxu0 0
        %532 = vmatpush1.bf16.msra.mxu0 0
        %533 = vmatprep.subr.bf16.mxu0 0
        %534 = vmatpush1.bf16.msra.mxu0 0
        %535 = vmatprep.subr.bf16.mxu0 0
        %536 = vmatpush1.bf16.msra.mxu0 0
        %537 = vmatprep.subr.bf16.mxu0 0
        %538 = vmatpush1.bf16.msra.mxu0 0
        %539 = vmatprep.subr.bf16.mxu0 0
        %540 = vmatpush1.bf16.msra.mxu0 0
        %541 = vmatprep.mubr.bf16.mxu0 0
        %542 = vmatmul.mubr.bf16.gmra.mrb[0].mxu0 %v503
        %v543 = vpop.f32.mrb[0].mxu0
        %v544 = vadd.f32 %v499, %v543
        %v545 = vpop.f32.mrb[0].mxu0
        %v546 = vpop.f32.mrb[0].mxu0
        %v547 = vpop.f32.mrb[0].mxu0
        %548 = vdwg.mxu0
        %v550 = vsel %vm501, %v293, 0
        %v553 = vsel %vm505, %v479, 0
        %555 = vmatprep.subr.bf16.mxu0 0
        %556 = vmatpush1.bf16.msra.mxu0 %v553
        %557 = vmatprep.subr.bf16.mxu0 0
        %558 = vmatpush1.bf16.msra.mxu0 0
        %559 = vmatprep.subr.bf16.mxu0 0
        %560 = vmatpush1.bf16.msra.mxu0 0
        %561 = vmatprep.subr.bf16.mxu0 0
        %562 = vmatpush1.bf16.msra.mxu0 0
        %563 = vmatprep.subr.bf16.mxu0 0
        %564 = vmatpush1.bf16.msra.mxu0 0
        %565 = vmatprep.subr.bf16.mxu0 0
        %566 = vmatpush1.bf16.msra.mxu0 0
        %567 = vmatprep.subr.bf16.mxu0 0
        %568 = vmatpush1.bf16.msra.mxu0 0
        %569 = vmatprep.subr.bf16.mxu0 0
        %570 = vmatpush1.bf16.msra.mxu0 0
        %571 = vmatprep.subr.bf16.mxu0 0
        %572 = vmatpush1.bf16.msra.mxu0 0
        %573 = vmatprep.subr.bf16.mxu0 0
        %574 = vmatpush1.bf16.msra.mxu0 0
        %575 = vmatprep.subr.bf16.mxu0 0
        %576 = vmatpush1.bf16.msra.mxu0 0
        %577 = vmatprep.subr.bf16.mxu0 0
        %578 = vmatpush1.bf16.msra.mxu0 0
        %579 = vmatprep.subr.bf16.mxu0 0
        %580 = vmatpush1.bf16.msra.mxu0 0
        %581 = vmatprep.subr.bf16.mxu0 0
        %582 = vmatpush1.bf16.msra.mxu0 0
        %583 = vmatprep.subr.bf16.mxu0 0
        %584 = vmatpush1.bf16.msra.mxu0 0
        %585 = vmatprep.subr.bf16.mxu0 0
        %586 = vmatpush1.bf16.msra.mxu0 0
        %587 = vmatprep.mubr.bf16.mxu0 0
        %588 = vmatmul.mubr.bf16.gmra.mrb[0].mxu0 %v550
        %v589 = vpop.f32.mrb[0].mxu0
        %v590 = vadd.f32 %v499, %v589
        %v591 = vpop.f32.mrb[0].mxu0
        %v592 = vpop.f32.mrb[0].mxu0
        %v593 = vpop.f32.mrb[0].mxu0
        %594 = vdwg.mxu0
        %v596 = vsel %vm501, %v294, 0
        %v599 = vsel %vm505, %v480, 0
        %601 = vmatprep.subr.bf16.mxu0 0
        %602 = vmatpush1.bf16.msra.mxu0 %v599
        %603 = vmatprep.subr.bf16.mxu0 0
        %604 = vmatpush1.bf16.msra.mxu0 0
        %605 = vmatprep.subr.bf16.mxu0 0
        %606 = vmatpush1.bf16.msra.mxu0 0
        %607 = vmatprep.subr.bf16.mxu0 0
        %608 = vmatpush1.bf16.msra.mxu0 0
        %609 = vmatprep.subr.bf16.mxu0 0
        %610 = vmatpush1.bf16.msra.mxu0 0
        %611 = vmatprep.subr.bf16.mxu0 0
        %612 = vmatpush1.bf16.msra.mxu0 0
        %613 = vmatprep.subr.bf16.mxu0 0
        %614 = vmatpush1.bf16.msra.mxu0 0
        %615 = vmatprep.subr.bf16.mxu0 0
        %616 = vmatpush1.bf16.msra.mxu0 0
        %617 = vmatprep.subr.bf16.mxu0 0
        %618 = vmatpush1.bf16.msra.mxu0 0
        %619 = vmatprep.subr.bf16.mxu0 0
        %620 = vmatpush1.bf16.msra.mxu0 0
        %621 = vmatprep.subr.bf16.mxu0 0
        %622 = vmatpush1.bf16.msra.mxu0 0
        %623 = vmatprep.subr.bf16.mxu0 0
        %624 = vmatpush1.bf16.msra.mxu0 0
        %625 = vmatprep.subr.bf16.mxu0 0
        %626 = vmatpush1.bf16.msra.mxu0 0
        %627 = vmatprep.subr.bf16.mxu0 0
        %628 = vmatpush1.bf16.msra.mxu0 0
        %629 = vmatprep.subr.bf16.mxu0 0
        %630 = vmatpush1.bf16.msra.mxu0 0
        %631 = vmatprep.subr.bf16.mxu0 0
        %632 = vmatpush1.bf16.msra.mxu0 0
        %633 = vmatprep.mubr.bf16.mxu0 0
        %634 = vmatmul.mubr.bf16.gmra.mrb[0].mxu0 %v596
        %v635 = vpop.f32.mrb[0].mxu0
        %v636 = vadd.f32 %v499, %v635
        %v637 = vpop.f32.mrb[0].mxu0
        %v638 = vpop.f32.mrb[0].mxu0
        %v639 = vpop.f32.mrb[0].mxu0
        %640 = vdwg.mxu0
        %v642 = vsel %vm501, %v295, 0
        %v645 = vsel %vm505, %v481, 0
        %647 = vmatprep.subr.bf16.mxu0 0
        %648 = vmatpush1.bf16.msra.mxu0 %v645
        %649 = vmatprep.subr.bf16.mxu0 0
        %650 = vmatpush1.bf16.msra.mxu0 0
        %651 = vmatprep.subr.bf16.mxu0 0
        %652 = vmatpush1.bf16.msra.mxu0 0
        %653 = vmatprep.subr.bf16.mxu0 0
        %654 = vmatpush1.bf16.msra.mxu0 0
        %655 = vmatprep.subr.bf16.mxu0 0
        %656 = vmatpush1.bf16.msra.mxu0 0
        %657 = vmatprep.subr.bf16.mxu0 0
        %658 = vmatpush1.bf16.msra.mxu0 0
        %659 = vmatprep.subr.bf16.mxu0 0
        %660 = vmatpush1.bf16.msra.mxu0 0
        %661 = vmatprep.subr.bf16.mxu0 0
        %662 = vmatpush1.bf16.msra.mxu0 0
        %663 = vmatprep.subr.bf16.mxu0 0
        %664 = vmatpush1.bf16.msra.mxu0 0
        %665 = vmatprep.subr.bf16.mxu0 0
        %666 = vmatpush1.bf16.msra.mxu0 0
        %667 = vmatprep.subr.bf16.mxu0 0
        %668 = vmatpush1.bf16.msra.mxu0 0
        %669 = vmatprep.subr.bf16.mxu0 0
        %670 = vmatpush1.bf16.msra.mxu0 0
        %671 = vmatprep.subr.bf16.mxu0 0
        %672 = vmatpush1.bf16.msra.mxu0 0
        %673 = vmatprep.subr.bf16.mxu0 0
        %674 = vmatpush1.bf16.msra.mxu0 0
        %675 = vmatprep.subr.bf16.mxu0 0
        %676 = vmatpush1.bf16.msra.mxu0 0
        %677 = vmatprep.subr.bf16.mxu0 0
        %678 = vmatpush1.bf16.msra.mxu0 0
        %679 = vmatprep.mubr.bf16.mxu0 0
        %680 = vmatmul.mubr.bf16.gmra.mrb[0].mxu0 %v642
        %v681 = vpop.f32.mrb[0].mxu0
        %v682 = vadd.f32 %v499, %v681
        %v683 = vpop.f32.mrb[0].mxu0
        %v684 = vpop.f32.mrb[0].mxu0
        %v685 = vpop.f32.mrb[0].mxu0
        %686 = vdwg.mxu0
        %v688 = vsel %vm501, %v296, 0
        %v691 = vsel %vm505, %v482, 0
        %693 = vmatprep.subr.bf16.mxu0 0
        %694 = vmatpush1.bf16.msra.mxu0 %v691
        %695 = vmatprep.subr.bf16.mxu0 0
        %696 = vmatpush1.bf16.msra.mxu0 0
        %697 = vmatprep.subr.bf16.mxu0 0
        %698 = vmatpush1.bf16.msra.mxu0 0
        %699 = vmatprep.subr.bf16.mxu0 0
        %700 = vmatpush1.bf16.msra.mxu0 0
        %701 = vmatprep.subr.bf16.mxu0 0
        %702 = vmatpush1.bf16.msra.mxu0 0
        %703 = vmatprep.subr.bf16.mxu0 0
        %704 = vmatpush1.bf16.msra.mxu0 0
        %705 = vmatprep.subr.bf16.mxu0 0
        %706 = vmatpush1.bf16.msra.mxu0 0
        %707 = vmatprep.subr.bf16.mxu0 0
        %708 = vmatpush1.bf16.msra.mxu0 0
        %709 = vmatprep.subr.bf16.mxu0 0
        %710 = vmatpush1.bf16.msra.mxu0 0
        %711 = vmatprep.subr.bf16.mxu0 0
        %712 = vmatpush1.bf16.msra.mxu0 0
        %713 = vmatprep.subr.bf16.mxu0 0
        %714 = vmatpush1.bf16.msra.mxu0 0
        %715 = vmatprep.subr.bf16.mxu0 0
        %716 = vmatpush1.bf16.msra.mxu0 0
        %717 = vmatprep.subr.bf16.mxu0 0
        %718 = vmatpush1.bf16.msra.mxu0 0
        %719 = vmatprep.subr.bf16.mxu0 0
        %720 = vmatpush1.bf16.msra.mxu0 0
        %721 = vmatprep.subr.bf16.mxu0 0
        %722 = vmatpush1.bf16.msra.mxu0 0
        %723 = vmatprep.subr.bf16.mxu0 0
        %724 = vmatpush1.bf16.msra.mxu0 0
        %725 = vmatprep.mubr.bf16.mxu0 0
        %726 = vmatmul.mubr.bf16.gmra.mrb[0].mxu0 %v688
        %v727 = vpop.f32.mrb[0].mxu0
        %v728 = vadd.f32 %v499, %v727
        %v729 = vpop.f32.mrb[0].mxu0
        %v730 = vpop.f32.mrb[0].mxu0
        %v731 = vpop.f32.mrb[0].mxu0
        %732 = vdwg.mxu0
        %v734 = vsel %vm501, %v297, 0
        %v737 = vsel %vm505, %v483, 0
        %739 = vmatprep.subr.bf16.mxu0 0
        %740 = vmatpush1.bf16.msra.mxu0 %v737
        %741 = vmatprep.subr.bf16.mxu0 0
        %742 = vmatpush1.bf16.msra.mxu0 0
        %743 = vmatprep.subr.bf16.mxu0 0
        %744 = vmatpush1.bf16.msra.mxu0 0
        %745 = vmatprep.subr.bf16.mxu0 0
        %746 = vmatpush1.bf16.msra.mxu0 0
        %747 = vmatprep.subr.bf16.mxu0 0
        %748 = vmatpush1.bf16.msra.mxu0 0
        %749 = vmatprep.subr.bf16.mxu0 0
        %750 = vmatpush1.bf16.msra.mxu0 0
        %751 = vmatprep.subr.bf16.mxu0 0
        %752 = vmatpush1.bf16.msra.mxu0 0
        %753 = vmatprep.subr.bf16.mxu0 0
        %754 = vmatpush1.bf16.msra.mxu0 0
        %755 = vmatprep.subr.bf16.mxu0 0
        %756 = vmatpush1.bf16.msra.mxu0 0
        %757 = vmatprep.subr.bf16.mxu0 0
        %758 = vmatpush1.bf16.msra.mxu0 0
        %759 = vmatprep.subr.bf16.mxu0 0
        %760 = vmatpush1.bf16.msra.mxu0 0
        %761 = vmatprep.subr.bf16.mxu0 0
        %762 = vmatpush1.bf16.msra.mxu0 0
        %763 = vmatprep.subr.bf16.mxu0 0
        %764 = vmatpush1.bf16.msra.mxu0 0
        %765 = vmatprep.subr.bf16.mxu0 0
        %766 = vmatpush1.bf16.msra.mxu0 0
        %767 = vmatprep.subr.bf16.mxu0 0
        %768 = vmatpush1.bf16.msra.mxu0 0
        %769 = vmatprep.subr.bf16.mxu0 0
        %770 = vmatpush1.bf16.msra.mxu0 0
        %771 = vmatprep.mubr.bf16.mxu0 0
        %772 = vmatmul.mubr.bf16.gmra.mrb[0].mxu0 %v734
        %v773 = vpop.f32.mrb[0].mxu0
        %v774 = vadd.f32 %v499, %v773
        %v775 = vpop.f32.mrb[0].mxu0
        %v776 = vpop.f32.mrb[0].mxu0
        %v777 = vpop.f32.mrb[0].mxu0
        %778 = vdwg.mxu0
        %v780 = vsel %vm501, %v298, 0
        %v783 = vsel %vm505, %v484, 0
        %785 = vmatprep.subr.bf16.mxu0 0
        %786 = vmatpush1.bf16.msra.mxu0 %v783
        %787 = vmatprep.subr.bf16.mxu0 0
        %788 = vmatpush1.bf16.msra.mxu0 0
        %789 = vmatprep.subr.bf16.mxu0 0
        %790 = vmatpush1.bf16.msra.mxu0 0
        %791 = vmatprep.subr.bf16.mxu0 0
        %792 = vmatpush1.bf16.msra.mxu0 0
        %793 = vmatprep.subr.bf16.mxu0 0
        %794 = vmatpush1.bf16.msra.mxu0 0
        %795 = vmatprep.subr.bf16.mxu0 0
        %796 = vmatpush1.bf16.msra.mxu0 0
        %797 = vmatprep.subr.bf16.mxu0 0
        %798 = vmatpush1.bf16.msra.mxu0 0
        %799 = vmatprep.subr.bf16.mxu0 0
        %800 = vmatpush1.bf16.msra.mxu0 0
        %801 = vmatprep.subr.bf16.mxu0 0
        %802 = vmatpush1.bf16.msra.mxu0 0
        %803 = vmatprep.subr.bf16.mxu0 0
        %804 = vmatpush1.bf16.msra.mxu0 0
        %805 = vmatprep.subr.bf16.mxu0 0
        %806 = vmatpush1.bf16.msra.mxu0 0
        %807 = vmatprep.subr.bf16.mxu0 0
        %808 = vmatpush1.bf16.msra.mxu0 0
        %809 = vmatprep.subr.bf16.mxu0 0
        %810 = vmatpush1.bf16.msra.mxu0 0
        %811 = vmatprep.subr.bf16.mxu0 0
        %812 = vmatpush1.bf16.msra.mxu0 0
        %813 = vmatprep.subr.bf16.mxu0 0
        %814 = vmatpush1.bf16.msra.mxu0 0
        %815 = vmatprep.subr.bf16.mxu0 0
        %816 = vmatpush1.bf16.msra.mxu0 0
        %817 = vmatprep.mubr.bf16.mxu0 0
        %818 = vmatmul.mubr.bf16.gmra.mrb[0].mxu0 %v780
        %v819 = vpop.f32.mrb[0].mxu0
        %v820 = vadd.f32 %v499, %v819
        %v821 = vpop.f32.mrb[0].mxu0
        %v822 = vpop.f32.mrb[0].mxu0
        %v823 = vpop.f32.mrb[0].mxu0
        %824 = vdwg.mxu0
        %v826 = vsel %vm501, %v299, 0
        %v829 = vsel %vm505, %v485, 0
        %831 = vmatprep.subr.bf16.mxu0 0
        %832 = vmatpush1.bf16.msra.mxu0 %v829
        %833 = vmatprep.subr.bf16.mxu0 0
        %834 = vmatpush1.bf16.msra.mxu0 0
        %835 = vmatprep.subr.bf16.mxu0 0
        %836 = vmatpush1.bf16.msra.mxu0 0
        %837 = vmatprep.subr.bf16.mxu0 0
        %838 = vmatpush1.bf16.msra.mxu0 0
        %839 = vmatprep.subr.bf16.mxu0 0
        %840 = vmatpush1.bf16.msra.mxu0 0
        %841 = vmatprep.subr.bf16.mxu0 0
        %842 = vmatpush1.bf16.msra.mxu0 0
        %843 = vmatprep.subr.bf16.mxu0 0
        %844 = vmatpush1.bf16.msra.mxu0 0
        %845 = vmatprep.subr.bf16.mxu0 0
        %846 = vmatpush1.bf16.msra.mxu0 0
        %847 = vmatprep.subr.bf16.mxu0 0
        %848 = vmatpush1.bf16.msra.mxu0 0
        %849 = vmatprep.subr.bf16.mxu0 0
        %850 = vmatpush1.bf16.msra.mxu0 0
        %851 = vmatprep.subr.bf16.mxu0 0
        %852 = vmatpush1.bf16.msra.mxu0 0
        %853 = vmatprep.subr.bf16.mxu0 0
        %854 = vmatpush1.bf16.msra.mxu0 0
        %855 = vmatprep.subr.bf16.mxu0 0
        %856 = vmatpush1.bf16.msra.mxu0 0
        %857 = vmatprep.subr.bf16.mxu0 0
        %858 = vmatpush1.bf16.msra.mxu0 0
        %859 = vmatprep.subr.bf16.mxu0 0
        %860 = vmatpush1.bf16.msra.mxu0 0
        %861 = vmatprep.subr.bf16.mxu0 0
        %862 = vmatpush1.bf16.msra.mxu0 0
        %863 = vmatprep.mubr.bf16.mxu0 0
        %864 = vmatmul.mubr.bf16.gmra.mrb[0].mxu0 %v826
        %v865 = vpop.f32.mrb[0].mxu0
        %v866 = vadd.f32 %v499, %v865
        %v867 = vpop.f32.mrb[0].mxu0
        %v868 = vpop.f32.mrb[0].mxu0
        %v869 = vpop.f32.mrb[0].mxu0
        %870 = vdwg.mxu0
        %v872 = vsel %vm501, %v300, 0
        %v875 = vsel %vm505, %v486, 0
        %877 = vmatprep.subr.bf16.mxu0 0
        %878 = vmatpush1.bf16.msra.mxu0 %v875
        %879 = vmatprep.subr.bf16.mxu0 0
        %880 = vmatpush1.bf16.msra.mxu0 0
        %881 = vmatprep.subr.bf16.mxu0 0
        %882 = vmatpush1.bf16.msra.mxu0 0
        %883 = vmatprep.subr.bf16.mxu0 0
        %884 = vmatpush1.bf16.msra.mxu0 0
        %885 = vmatprep.subr.bf16.mxu0 0
        %886 = vmatpush1.bf16.msra.mxu0 0
        %887 = vmatprep.subr.bf16.mxu0 0
        %888 = vmatpush1.bf16.msra.mxu0 0
        %889 = vmatprep.subr.bf16.mxu0 0
        %890 = vmatpush1.bf16.msra.mxu0 0
        %891 = vmatprep.subr.bf16.mxu0 0
        %892 = vmatpush1.bf16.msra.mxu0 0
        %893 = vmatprep.subr.bf16.mxu0 0
        %894 = vmatpush1.bf16.msra.mxu0 0
        %895 = vmatprep.subr.bf16.mxu0 0
        %896 = vmatpush1.bf16.msra.mxu0 0
        %897 = vmatprep.subr.bf16.mxu0 0
        %898 = vmatpush1.bf16.msra.mxu0 0
        %899 = vmatprep.subr.bf16.mxu0 0
        %900 = vmatpush1.bf16.msra.mxu0 0
        %901 = vmatprep.subr.bf16.mxu0 0
        %902 = vmatpush1.bf16.msra.mxu0 0
        %903 = vmatprep.subr.bf16.mxu0 0
        %904 = vmatpush1.bf16.msra.mxu0 0
        %905 = vmatprep.subr.bf16.mxu0 0
        %906 = vmatpush1.bf16.msra.mxu0 0
        %907 = vmatprep.subr.bf16.mxu0 0
        %908 = vmatpush1.bf16.msra.mxu0 0
        %909 = vmatprep.mubr.bf16.mxu0 0
        %910 = vmatmul.mubr.bf16.gmra.mrb[0].mxu0 %v872
        %v911 = vpop.f32.mrb[0].mxu0
        %v912 = vadd.f32 %v499, %v911
        %v913 = vpop.f32.mrb[0].mxu0
        %v914 = vpop.f32.mrb[0].mxu0
        %v915 = vpop.f32.mrb[0].mxu0
        %916 = vdwg.mxu0
        %v918 = vsel %vm501, %v301, 0
        %v921 = vsel %vm505, %v487, 0
        %923 = vmatprep.subr.bf16.mxu0 0
        %924 = vmatpush1.bf16.msra.mxu0 %v921
        %925 = vmatprep.subr.bf16.mxu0 0
        %926 = vmatpush1.bf16.msra.mxu0 0
        %927 = vmatprep.subr.bf16.mxu0 0
        %928 = vmatpush1.bf16.msra.mxu0 0
        %929 = vmatprep.subr.bf16.mxu0 0
        %930 = vmatpush1.bf16.msra.mxu0 0
        %931 = vmatprep.subr.bf16.mxu0 0
        %932 = vmatpush1.bf16.msra.mxu0 0
        %933 = vmatprep.subr.bf16.mxu0 0
        %934 = vmatpush1.bf16.msra.mxu0 0
        %935 = vmatprep.subr.bf16.mxu0 0
        %936 = vmatpush1.bf16.msra.mxu0 0
        %937 = vmatprep.subr.bf16.mxu0 0
        %938 = vmatpush1.bf16.msra.mxu0 0
        %939 = vmatprep.subr.bf16.mxu0 0
        %940 = vmatpush1.bf16.msra.mxu0 0
        %941 = vmatprep.subr.bf16.mxu0 0
        %942 = vmatpush1.bf16.msra.mxu0 0
        %943 = vmatprep.subr.bf16.mxu0 0
        %944 = vmatpush1.bf16.msra.mxu0 0
        %945 = vmatprep.subr.bf16.mxu0 0
        %946 = vmatpush1.bf16.msra.mxu0 0
        %947 = vmatprep.subr.bf16.mxu0 0
        %948 = vmatpush1.bf16.msra.mxu0 0
        %949 = vmatprep.subr.bf16.mxu0 0
        %950 = vmatpush1.bf16.msra.mxu0 0
        %951 = vmatprep.subr.bf16.mxu0 0
        %952 = vmatpush1.bf16.msra.mxu0 0
        %953 = vmatprep.subr.bf16.mxu0 0
        %954 = vmatpush1.bf16.msra.mxu0 0
        %955 = vmatprep.mubr.bf16.mxu0 0
        %956 = vmatmul.mubr.bf16.gmra.mrb[0].mxu0 %v918
        %v957 = vpop.f32.mrb[0].mxu0
        %v958 = vadd.f32 %v499, %v957
        %v959 = vpop.f32.mrb[0].mxu0
        %v960 = vpop.f32.mrb[0].mxu0
        %v961 = vpop.f32.mrb[0].mxu0
        %962 = vdwg.mxu0
        %v964 = vsel %vm501, %v302, 0
        %v967 = vsel %vm505, %v488, 0
        %969 = vmatprep.subr.bf16.mxu0 0
        %970 = vmatpush1.bf16.msra.mxu0 %v967
        %971 = vmatprep.subr.bf16.mxu0 0
        %972 = vmatpush1.bf16.msra.mxu0 0
        %973 = vmatprep.subr.bf16.mxu0 0
        %974 = vmatpush1.bf16.msra.mxu0 0
        %975 = vmatprep.subr.bf16.mxu0 0
        %976 = vmatpush1.bf16.msra.mxu0 0
        %977 = vmatprep.subr.bf16.mxu0 0
        %978 = vmatpush1.bf16.msra.mxu0 0
        %979 = vmatprep.subr.bf16.mxu0 0
        %980 = vmatpush1.bf16.msra.mxu0 0
        %981 = vmatprep.subr.bf16.mxu0 0
        %982 = vmatpush1.bf16.msra.mxu0 0
        %983 = vmatprep.subr.bf16.mxu0 0
        %984 = vmatpush1.bf16.msra.mxu0 0
        %985 = vmatprep.subr.bf16.mxu0 0
        %986 = vmatpush1.bf16.msra.mxu0 0
        %987 = vmatprep.subr.bf16.mxu0 0
        %988 = vmatpush1.bf16.msra.mxu0 0
        %989 = vmatprep.subr.bf16.mxu0 0
        %990 = vmatpush1.bf16.msra.mxu0 0
        %991 = vmatprep.subr.bf16.mxu0 0
        %992 = vmatpush1.bf16.msra.mxu0 0
        %993 = vmatprep.subr.bf16.mxu0 0
        %994 = vmatpush1.bf16.msra.mxu0 0
        %995 = vmatprep.subr.bf16.mxu0 0
        %996 = vmatpush1.bf16.msra.mxu0 0
        %997 = vmatprep.subr.bf16.mxu0 0
        %998 = vmatpush1.bf16.msra.mxu0 0
        %999 = vmatprep.subr.bf16.mxu0 0
        %1000 = vmatpush1.bf16.msra.mxu0 0
        %1001 = vmatprep.mubr.bf16.mxu0 0
        %1002 = vmatmul.mubr.bf16.gmra.mrb[0].mxu0 %v964
        %v1003 = vpop.f32.mrb[0].mxu0
        %v1004 = vadd.f32 %v499, %v1003
        %v1005 = vpop.f32.mrb[0].mxu0
        %v1006 = vpop.f32.mrb[0].mxu0
        %v1007 = vpop.f32.mrb[0].mxu0
        %1008 = vdwg.mxu0
        %v1010 = vsel %vm501, %v303, 0
        %v1013 = vsel %vm505, %v489, 0
        %1015 = vmatprep.subr.bf16.mxu0 0
        %1016 = vmatpush1.bf16.msra.mxu0 %v1013
        %1017 = vmatprep.subr.bf16.mxu0 0
        %1018 = vmatpush1.bf16.msra.mxu0 0
        %1019 = vmatprep.subr.bf16.mxu0 0
        %1020 = vmatpush1.bf16.msra.mxu0 0
        %1021 = vmatprep.subr.bf16.mxu0 0
        %1022 = vmatpush1.bf16.msra.mxu0 0
        %1023 = vmatprep.subr.bf16.mxu0 0
        %1024 = vmatpush1.bf16.msra.mxu0 0
        %1025 = vmatprep.subr.bf16.mxu0 0
        %1026 = vmatpush1.bf16.msra.mxu0 0
        %1027 = vmatprep.subr.bf16.mxu0 0
        %1028 = vmatpush1.bf16.msra.mxu0 0
        %1029 = vmatprep.subr.bf16.mxu0 0
        %1030 = vmatpush1.bf16.msra.mxu0 0
        %1031 = vmatprep.subr.bf16.mxu0 0
        %1032 = vmatpush1.bf16.msra.mxu0 0
        %1033 = vmatprep.subr.bf16.mxu0 0
        %1034 = vmatpush1.bf16.msra.mxu0 0
        %1035 = vmatprep.subr.bf16.mxu0 0
        %1036 = vmatpush1.bf16.msra.mxu0 0
        %1037 = vmatprep.subr.bf16.mxu0 0
        %1038 = vmatpush1.bf16.msra.mxu0 0
        %1039 = vmatprep.subr.bf16.mxu0 0
        %1040 = vmatpush1.bf16.msra.mxu0 0
        %1041 = vmatprep.subr.bf16.mxu0 0
        %1042 = vmatpush1.bf16.msra.mxu0 0
        %1043 = vmatprep.subr.bf16.mxu0 0
        %1044 = vmatpush1.bf16.msra.mxu0 0
        %1045 = vmatprep.subr.bf16.mxu0 0
        %1046 = vmatpush1.bf16.msra.mxu0 0
        %1047 = vmatprep.mubr.bf16.mxu0 0
        %1048 = vmatmul.mubr.bf16.gmra.mrb[0].mxu0 %v1010
        %v1049 = vpop.f32.mrb[0].mxu0
        %v1050 = vadd.f32 %v499, %v1049
        %v1051 = vpop.f32.mrb[0].mxu0
        %v1052 = vpop.f32.mrb[0].mxu0
        %v1053 = vpop.f32.mrb[0].mxu0
        %1054 = vdwg.mxu0
        %v1056 = vsel %vm501, %v304, 0
        %v1059 = vsel %vm505, %v490, 0
        %1061 = vmatprep.subr.bf16.mxu0 0
        %1062 = vmatpush1.bf16.msra.mxu0 %v1059
        %1063 = vmatprep.subr.bf16.mxu0 0
        %1064 = vmatpush1.bf16.msra.mxu0 0
        %1065 = vmatprep.subr.bf16.mxu0 0
        %1066 = vmatpush1.bf16.msra.mxu0 0
        %1067 = vmatprep.subr.bf16.mxu0 0
        %1068 = vmatpush1.bf16.msra.mxu0 0
        %1069 = vmatprep.subr.bf16.mxu0 0
        %1070 = vmatpush1.bf16.msra.mxu0 0
        %1071 = vmatprep.subr.bf16.mxu0 0
        %1072 = vmatpush1.bf16.msra.mxu0 0
        %1073 = vmatprep.subr.bf16.mxu0 0
        %1074 = vmatpush1.bf16.msra.mxu0 0
        %1075 = vmatprep.subr.bf16.mxu0 0
        %1076 = vmatpush1.bf16.msra.mxu0 0
        %1077 = vmatprep.subr.bf16.mxu0 0
        %1078 = vmatpush1.bf16.msra.mxu0 0
        %1079 = vmatprep.subr.bf16.mxu0 0
        %1080 = vmatpush1.bf16.msra.mxu0 0
        %1081 = vmatprep.subr.bf16.mxu0 0
        %1082 = vmatpush1.bf16.msra.mxu0 0
        %1083 = vmatprep.subr.bf16.mxu0 0
        %1084 = vmatpush1.bf16.msra.mxu0 0
        %1085 = vmatprep.subr.bf16.mxu0 0
        %1086 = vmatpush1.bf16.msra.mxu0 0
        %1087 = vmatprep.subr.bf16.mxu0 0
        %1088 = vmatpush1.bf16.msra.mxu0 0
        %1089 = vmatprep.subr.bf16.mxu0 0
        %1090 = vmatpush1.bf16.msra.mxu0 0
        %1091 = vmatprep.subr.bf16.mxu0 0
        %1092 = vmatpush1.bf16.msra.mxu0 0
        %1093 = vmatprep.mubr.bf16.mxu0 0
        %1094 = vmatmul.mubr.bf16.gmra.mrb[0].mxu0 %v1056
        %v1095 = vpop.f32.mrb[0].mxu0
        %v1096 = vadd.f32 %v499, %v1095
        %v1097 = vpop.f32.mrb[0].mxu0
        %v1098 = vpop.f32.mrb[0].mxu0
        %v1099 = vpop.f32.mrb[0].mxu0
        %1100 = vdwg.mxu0
        %v1102 = vsel %vm501, %v305, 0
        %v1105 = vsel %vm505, %v491, 0
        %1107 = vmatprep.subr.bf16.mxu0 0
        %1108 = vmatpush1.bf16.msra.mxu0 %v1105
        %1109 = vmatprep.subr.bf16.mxu0 0
        %1110 = vmatpush1.bf16.msra.mxu0 0
        %1111 = vmatprep.subr.bf16.mxu0 0
        %1112 = vmatpush1.bf16.msra.mxu0 0
        %1113 = vmatprep.subr.bf16.mxu0 0
        %1114 = vmatpush1.bf16.msra.mxu0 0
        %1115 = vmatprep.subr.bf16.mxu0 0
        %1116 = vmatpush1.bf16.msra.mxu0 0
        %1117 = vmatprep.subr.bf16.mxu0 0
        %1118 = vmatpush1.bf16.msra.mxu0 0
        %1119 = vmatprep.subr.bf16.mxu0 0
        %1120 = vmatpush1.bf16.msra.mxu0 0
        %1121 = vmatprep.subr.bf16.mxu0 0
        %1122 = vmatpush1.bf16.msra.mxu0 0
        %1123 = vmatprep.subr.bf16.mxu0 0
        %1124 = vmatpush1.bf16.msra.mxu0 0
        %1125 = vmatprep.subr.bf16.mxu0 0
        %1126 = vmatpush1.bf16.msra.mxu0 0
        %1127 = vmatprep.subr.bf16.mxu0 0
        %1128 = vmatpush1.bf16.msra.mxu0 0
        %1129 = vmatprep.subr.bf16.mxu0 0
        %1130 = vmatpush1.bf16.msra.mxu0 0
        %1131 = vmatprep.subr.bf16.mxu0 0
        %1132 = vmatpush1.bf16.msra.mxu0 0
        %1133 = vmatprep.subr.bf16.mxu0 0
        %1134 = vmatpush1.bf16.msra.mxu0 0
        %1135 = vmatprep.subr.bf16.mxu0 0
        %1136 = vmatpush1.bf16.msra.mxu0 0
        %1137 = vmatprep.subr.bf16.mxu0 0
        %1138 = vmatpush1.bf16.msra.mxu0 0
        %1139 = vmatprep.mubr.bf16.mxu0 0
        %1140 = vmatmul.mubr.bf16.gmra.mrb[0].mxu0 %v1102
        %v1141 = vpop.f32.mrb[0].mxu0
        %v1142 = vadd.f32 %v499, %v1141
        %v1143 = vpop.f32.mrb[0].mxu0
        %v1144 = vpop.f32.mrb[0].mxu0
        %v1145 = vpop.f32.mrb[0].mxu0
        %1146 = vdwg.mxu0
        %v1148 = vsel %vm501, %v306, 0
        %v1151 = vsel %vm505, %v492, 0
        %1153 = vmatprep.subr.bf16.mxu0 0
        %1154 = vmatpush1.bf16.msra.mxu0 %v1151
        %1155 = vmatprep.subr.bf16.mxu0 0
        %1156 = vmatpush1.bf16.msra.mxu0 0
        %1157 = vmatprep.subr.bf16.mxu0 0
        %1158 = vmatpush1.bf16.msra.mxu0 0
        %1159 = vmatprep.subr.bf16.mxu0 0
        %1160 = vmatpush1.bf16.msra.mxu0 0
        %1161 = vmatprep.subr.bf16.mxu0 0
        %1162 = vmatpush1.bf16.msra.mxu0 0
        %1163 = vmatprep.subr.bf16.mxu0 0
        %1164 = vmatpush1.bf16.msra.mxu0 0
        %1165 = vmatprep.subr.bf16.mxu0 0
        %1166 = vmatpush1.bf16.msra.mxu0 0
        %1167 = vmatprep.subr.bf16.mxu0 0
        %1168 = vmatpush1.bf16.msra.mxu0 0
        %1169 = vmatprep.subr.bf16.mxu0 0
        %1170 = vmatpush1.bf16.msra.mxu0 0
        %1171 = vmatprep.subr.bf16.mxu0 0
        %1172 = vmatpush1.bf16.msra.mxu0 0
        %1173 = vmatprep.subr.bf16.mxu0 0
        %1174 = vmatpush1.bf16.msra.mxu0 0
        %1175 = vmatprep.subr.bf16.mxu0 0
        %1176 = vmatpush1.bf16.msra.mxu0 0
        %1177 = vmatprep.subr.bf16.mxu0 0
        %1178 = vmatpush1.bf16.msra.mxu0 0
        %1179 = vmatprep.subr.bf16.mxu0 0
        %1180 = vmatpush1.bf16.msra.mxu0 0
        %1181 = vmatprep.subr.bf16.mxu0 0
        %1182 = vmatpush1.bf16.msra.mxu0 0
        %1183 = vmatprep.subr.bf16.mxu0 0
        %1184 = vmatpush1.bf16.msra.mxu0 0
        %1185 = vmatprep.mubr.bf16.mxu0 0
        %1186 = vmatmul.mubr.bf16.gmra.mrb[0].mxu0 %v1148
        %v1187 = vpop.f32.mrb[0].mxu0
        %v1188 = vadd.f32 %v499, %v1187
        %v1189 = vpop.f32.mrb[0].mxu0
        %v1190 = vpop.f32.mrb[0].mxu0
        %v1191 = vpop.f32.mrb[0].mxu0
        %1192 = vdwg.mxu0
        %v1194 = vsel %vm501, %v307, 0
        %v1197 = vsel %vm505, %v493, 0
        %1199 = vmatprep.subr.bf16.mxu0 0
        %1200 = vmatpush1.bf16.msra.mxu0 %v1197
        %1201 = vmatprep.subr.bf16.mxu0 0
        %1202 = vmatpush1.bf16.msra.mxu0 0
        %1203 = vmatprep.subr.bf16.mxu0 0
        %1204 = vmatpush1.bf16.msra.mxu0 0
        %1205 = vmatprep.subr.bf16.mxu0 0
        %1206 = vmatpush1.bf16.msra.mxu0 0
        %1207 = vmatprep.subr.bf16.mxu0 0
        %1208 = vmatpush1.bf16.msra.mxu0 0
        %1209 = vmatprep.subr.bf16.mxu0 0
        %1210 = vmatpush1.bf16.msra.mxu0 0
        %1211 = vmatprep.subr.bf16.mxu0 0
        %1212 = vmatpush1.bf16.msra.mxu0 0
        %1213 = vmatprep.subr.bf16.mxu0 0
        %1214 = vmatpush1.bf16.msra.mxu0 0
        %1215 = vmatprep.subr.bf16.mxu0 0
        %1216 = vmatpush1.bf16.msra.mxu0 0
        %1217 = vmatprep.subr.bf16.mxu0 0
        %1218 = vmatpush1.bf16.msra.mxu0 0
        %1219 = vmatprep.subr.bf16.mxu0 0
        %1220 = vmatpush1.bf16.msra.mxu0 0
        %1221 = vmatprep.subr.bf16.mxu0 0
        %1222 = vmatpush1.bf16.msra.mxu0 0
        %1223 = vmatprep.subr.bf16.mxu0 0
        %1224 = vmatpush1.bf16.msra.mxu0 0
        %1225 = vmatprep.subr.bf16.mxu0 0
        %1226 = vmatpush1.bf16.msra.mxu0 0
        %1227 = vmatprep.subr.bf16.mxu0 0
        %1228 = vmatpush1.bf16.msra.mxu0 0
        %1229 = vmatprep.subr.bf16.mxu0 0
        %1230 = vmatpush1.bf16.msra.mxu0 0
        %1231 = vmatprep.mubr.bf16.mxu0 0
        %1232 = vmatmul.mubr.bf16.gmra.mrb[0].mxu0 %v1194
        %v1233 = vpop.f32.mrb[0].mxu0
        %v1234 = vadd.f32 %v499, %v1233
        %v1235 = vpop.f32.mrb[0].mxu0
        %v1236 = vpop.f32.mrb[0].mxu0
        %v1237 = vpop.f32.mrb[0].mxu0
        %1238 = vdwg.mxu0
        %v1239 = vmax.f32 %v544, 0.0
        %v1240 = vmax.f32 %v590, 0.0
        %v1241 = vmax.f32 %v636, 0.0
        %v1242 = vmax.f32 %v682, 0.0
        %v1243 = vmax.f32 %v728, 0.0
        %v1244 = vmax.f32 %v774, 0.0
        %v1245 = vmax.f32 %v820, 0.0
        %v1246 = vmax.f32 %v866, 0.0
        %v1247 = vmax.f32 %v912, 0.0
        %v1248 = vmax.f32 %v958, 0.0
        %v1249 = vmax.f32 %v1004, 0.0
        %v1250 = vmax.f32 %v1050, 0.0
        %v1251 = vmax.f32 %v1096, 0.0
        %v1252 = vmax.f32 %v1142, 0.0
        %v1253 = vmax.f32 %v1188, 0.0
        %v1254 = vmax.f32 %v1234, 0.0
        %v1255 = vpack.c.bf16 %v1240, %v1239
        %v1256 = vpack.c.bf16 %v1242, %v1241
        %v1257 = vpack.c.bf16 %v1244, %v1243
        %v1258 = vpack.c.bf16 %v1246, %v1245
        %v1259 = vpack.c.bf16 %v1248, %v1247
        %v1260 = vpack.c.bf16 %v1250, %v1249
        %v1261 = vpack.c.bf16 %v1252, %v1251
        %v1262 = vpack.c.bf16 %v1254, %v1253
        %v1263 = vld [vmem:[%s4] sm:$0xf]
        %v1264 = vld [vmem:[%s4 + $0x4] sm:$0xf]
        %v1265 = vld [vmem:[%s4 + $0x8] sm:$0xf]
        %v1266 = vld [vmem:[%s4 + $0xc] sm:$0xf]
        %v1267 = vld [vmem:[%s4 + $0x10] sm:$0xf]
        %v1268 = vld [vmem:[%s4 + $0x14] sm:$0xf]
        %v1269 = vld [vmem:[%s4 + $0x18] sm:$0xf]
        %v1270 = vld [vmem:[%s4 + $0x1c] sm:$0xf]
        %v1279 = vunpack.c.l.b16 %v1263
        %v1280 = vunpack.c.l.b16 %v1264
        %v1281 = vunpack.c.l.b16 %v1265
        %v1282 = vunpack.c.l.b16 %v1266
        %v1283 = vunpack.c.l.b16 %v1267
        %v1284 = vunpack.c.l.b16 %v1268
        %v1285 = vunpack.c.l.b16 %v1269
        %v1286 = vunpack.c.l.b16 %v1270
        %v1287 = vpack.c.b16 %v1280, %v1279
        %v1288 = vpack.c.b16 %v1282, %v1281
        %v1289 = vpack.c.b16 %v1284, %v1283
        %v1290 = vpack.c.b16 %v1286, %v1285
        %vm1295 = vcmask 523264
        %v1297 = vsel %vm1295, %v1255, 0
        %v1300 = vsel %vm1295, %v1256, 0
        %v1303 = vsel %vm1295, %v1257, 0
        %v1306 = vsel %vm1295, %v1258, 0
        %v1309 = vsel %vm1295, %v1259, 0
        %v1312 = vsel %vm1295, %v1260, 0
        %v1315 = vsel %vm1295, %v1261, 0
        %v1318 = vsel %vm1295, %v1262, 0
        %1320 = vmatprep.subr.bf16.mxu0 0
        %1321 = vmatpush1.bf16.msra.mxu0 %v1287
        %1322 = vmatprep.subr.bf16.mxu0 0
        %1323 = vmatpush1.bf16.msra.mxu0 %v1288
        %1324 = vmatprep.subr.bf16.mxu0 0
        %1325 = vmatpush1.bf16.msra.mxu0 %v1289
        %1326 = vmatprep.subr.bf16.mxu0 0
        %1327 = vmatpush1.bf16.msra.mxu0 %v1290
        %1328 = vmatprep.subr.bf16.mxu0 0
        %1329 = vmatpush1.bf16.msra.mxu0 0
        %1330 = vmatprep.subr.bf16.mxu0 0
        %1331 = vmatpush1.bf16.msra.mxu0 0
        %1332 = vmatprep.subr.bf16.mxu0 0
        %1333 = vmatpush1.bf16.msra.mxu0 0
        %1334 = vmatprep.subr.bf16.mxu0 0
        %1335 = vmatpush1.bf16.msra.mxu0 0
        %1336 = vmatprep.subr.bf16.mxu0 0
        %1337 = vmatpush1.bf16.msra.mxu0 0
        %1338 = vmatprep.subr.bf16.mxu0 0
        %1339 = vmatpush1.bf16.msra.mxu0 0
        %1340 = vmatprep.subr.bf16.mxu0 0
        %1341 = vmatpush1.bf16.msra.mxu0 0
        %1342 = vmatprep.subr.bf16.mxu0 0
        %1343 = vmatpush1.bf16.msra.mxu0 0
        %1344 = vmatprep.subr.bf16.mxu0 0
        %1345 = vmatpush1.bf16.msra.mxu0 0
        %1346 = vmatprep.subr.bf16.mxu0 0
        %1347 = vmatpush1.bf16.msra.mxu0 0
        %1348 = vmatprep.subr.bf16.mxu0 0
        %1349 = vmatpush1.bf16.msra.mxu0 0
        %1350 = vmatprep.subr.bf16.mxu0 0
        %1351 = vmatpush1.bf16.msra.mxu0 0
        %1352 = vmatprep.mubr.bf16.mxu0 0
        %1353 = vmatmul.mubr.bf16.gmra.mrb[0].mxu0 %v1297
        %v1354 = vpop.f32.mrb[0].mxu0
        %v1355 = vadd.f32 0.0, %v1354
        %v1356 = vpop.f32.mrb[0].mxu0
        %v1357 = vpop.f32.mrb[0].mxu0
        %v1358 = vadd.f32 0.0, %v1357
        %v1359 = vpop.f32.mrb[0].mxu0
        %1360 = vmatprep.mubr.bf16.mxu0 0
        %1361 = vmatmul.mubr.bf16.gmra.mrb[0].mxu0 %v1300
        %v1362 = vpop.f32.mrb[0].mxu0
        %v1363 = vadd.f32 0.0, %v1362
        %v1364 = vpop.f32.mrb[0].mxu0
        %v1365 = vpop.f32.mrb[0].mxu0
        %v1366 = vadd.f32 0.0, %v1365
        %v1367 = vpop.f32.mrb[0].mxu0
        %1368 = vmatprep.mubr.bf16.mxu0 0
        %1369 = vmatmul.mubr.bf16.gmra.mrb[0].mxu0 %v1303
        %v1370 = vpop.f32.mrb[0].mxu0
        %v1371 = vadd.f32 0.0, %v1370
        %v1372 = vpop.f32.mrb[0].mxu0
        %v1373 = vpop.f32.mrb[0].mxu0
        %v1374 = vadd.f32 0.0, %v1373
        %v1375 = vpop.f32.mrb[0].mxu0
        %1376 = vmatprep.mubr.bf16.mxu0 0
        %1377 = vmatmul.mubr.bf16.gmra.mrb[0].mxu0 %v1306
        %v1378 = vpop.f32.mrb[0].mxu0
        %v1379 = vadd.f32 0.0, %v1378
        %v1380 = vpop.f32.mrb[0].mxu0
        %v1381 = vpop.f32.mrb[0].mxu0
        %v1382 = vadd.f32 0.0, %v1381
        %v1383 = vpop.f32.mrb[0].mxu0
        %1384 = vmatprep.mubr.bf16.mxu0 0
        %1385 = vmatmul.mubr.bf16.gmra.mrb[0].mxu0 %v1309
        %v1386 = vpop.f32.mrb[0].mxu0
        %v1387 = vadd.f32 0.0, %v1386
        %v1388 = vpop.f32.mrb[0].mxu0
        %v1389 = vpop.f32.mrb[0].mxu0
        %v1390 = vadd.f32 0.0, %v1389
        %v1391 = vpop.f32.mrb[0].mxu0
        %1392 = vmatprep.mubr.bf16.mxu0 0
        %1393 = vmatmul.mubr.bf16.gmra.mrb[0].mxu0 %v1312
        %v1394 = vpop.f32.mrb[0].mxu0
        %v1395 = vadd.f32 0.0, %v1394
        %v1396 = vpop.f32.mrb[0].mxu0
        %v1397 = vpop.f32.mrb[0].mxu0
        %v1398 = vadd.f32 0.0, %v1397
        %v1399 = vpop.f32.mrb[0].mxu0
        %1400 = vmatprep.mubr.bf16.mxu0 0
        %1401 = vmatmul.mubr.bf16.gmra.mrb[0].mxu0 %v1315
        %v1402 = vpop.f32.mrb[0].mxu0
        %v1403 = vadd.f32 0.0, %v1402
        %v1404 = vpop.f32.mrb[0].mxu0
        %v1405 = vpop.f32.mrb[0].mxu0
        %v1406 = vadd.f32 0.0, %v1405
        %v1407 = vpop.f32.mrb[0].mxu0
        %1408 = vmatprep.mubr.bf16.mxu0 0
        %1409 = vmatmul.mubr.bf16.gmra.mrb[0].mxu0 %v1318
        %v1410 = vpop.f32.mrb[0].mxu0
        %v1411 = vadd.f32 0.0, %v1410
        %v1412 = vpop.f32.mrb[0].mxu0
        %v1413 = vpop.f32.mrb[0].mxu0
        %v1414 = vadd.f32 0.0, %v1413
        %v1415 = vpop.f32.mrb[0].mxu0
        %1416 = vdwg.mxu0
        %v1417 = vpack.c.bf16 %v1355, %v1355
        %v1418 = vpack.c.bf16 %v1358, %v1358
        %v1419 = vpack.c.bf16 %v1363, %v1363
        %v1420 = vpack.c.bf16 %v1366, %v1366
        %v1421 = vpack.c.bf16 %v1371, %v1371
        %v1422 = vpack.c.bf16 %v1374, %v1374
        %v1423 = vpack.c.bf16 %v1379, %v1379
        %v1424 = vpack.c.bf16 %v1382, %v1382
        %v1425 = vpack.c.bf16 %v1387, %v1387
        %v1426 = vpack.c.bf16 %v1390, %v1390
        %v1427 = vpack.c.bf16 %v1395, %v1395
        %v1428 = vpack.c.bf16 %v1398, %v1398
        %v1429 = vpack.c.bf16 %v1403, %v1403
        %v1430 = vpack.c.bf16 %v1406, %v1406
        %v1431 = vpack.c.bf16 %v1411, %v1411
        %v1432 = vpack.c.bf16 %v1414, %v1414
        %v1433 = vld [vmem:[%s5] sm:$0xff]
        %1434 = vxpose.xlu0.c.b16.start [1/8] %v292, 128
        %1435 = vxpose.xlu0.c.b16.cont [2/8] 0, 128
        %1436 = vxpose.xlu0.c.b16.cont [3/8] 0, 128
        %1437 = vxpose.xlu0.c.b16.cont [4/8] 0, 128
        %1438 = vxpose.xlu0.c.b16.cont [5/8] 0, 128
        %1439 = vxpose.xlu0.c.b16.cont [6/8] 0, 128
        %1440 = vxpose.xlu0.c.b16.cont [7/8] 0, 128
        %1441 = vxpose.xlu0.c.b16.end [8/8] 0, 128
        %v1442 = vpop.trf.xlu0
        %v1443 = vpop.trf.xlu0
        %v1444 = vpop.trf.xlu0
        %v1445 = vpop.trf.xlu0
        %v1446 = vpop.trf.xlu0
        %v1447 = vpop.trf.xlu0
        %v1448 = vpop.trf.xlu0
        %v1449 = vpop.trf.xlu0
        %v1451 = vsel %vm501, %v1442, 0
        %v1454 = vsel %vm505, %v1417, 0
        %1456 = vmatprep.subr.bf16.mxu0 0
        %1457 = vmatpush1.bf16.msra.mxu0 %v1454
        %1458 = vmatprep.subr.bf16.mxu0 0
        %1459 = vmatpush1.bf16.msra.mxu0 0
        %1460 = vmatprep.subr.bf16.mxu0 0
        %1461 = vmatpush1.bf16.msra.mxu0 0
        %1462 = vmatprep.subr.bf16.mxu0 0
        %1463 = vmatpush1.bf16.msra.mxu0 0
        %1464 = vmatprep.subr.bf16.mxu0 0
        %1465 = vmatpush1.bf16.msra.mxu0 0
        %1466 = vmatprep.subr.bf16.mxu0 0
        %1467 = vmatpush1.bf16.msra.mxu0 0
        %1468 = vmatprep.subr.bf16.mxu0 0
        %1469 = vmatpush1.bf16.msra.mxu0 0
        %1470 = vmatprep.subr.bf16.mxu0 0
        %1471 = vmatpush1.bf16.msra.mxu0 0
        %1472 = vmatprep.subr.bf16.mxu0 0
        %1473 = vmatpush1.bf16.msra.mxu0 0
        %1474 = vmatprep.subr.bf16.mxu0 0
        %1475 = vmatpush1.bf16.msra.mxu0 0
        %1476 = vmatprep.subr.bf16.mxu0 0
        %1477 = vmatpush1.bf16.msra.mxu0 0
        %1478 = vmatprep.subr.bf16.mxu0 0
        %1479 = vmatpush1.bf16.msra.mxu0 0
        %1480 = vmatprep.subr.bf16.mxu0 0
        %1481 = vmatpush1.bf16.msra.mxu0 0
        %1482 = vmatprep.subr.bf16.mxu0 0
        %1483 = vmatpush1.bf16.msra.mxu0 0
        %1484 = vmatprep.subr.bf16.mxu0 0
        %1485 = vmatpush1.bf16.msra.mxu0 0
        %1486 = vmatprep.subr.bf16.mxu0 0
        %1487 = vmatpush1.bf16.msra.mxu0 0
        %1488 = vmatprep.mubr.bf16.mxu0 0
        %1489 = vmatmul.mubr.bf16.gmra.mrb[0].mxu0 %v1451
        %v1490 = vpop.f32.mrb[0].mxu0
        %v1491 = vadd.f32 %v1433, %v1490
        %v1492 = vpop.f32.mrb[0].mxu0
        %v1493 = vpop.f32.mrb[0].mxu0
        %v1494 = vpop.f32.mrb[0].mxu0
        %1495 = vdwg.mxu0
        %1496 = vxpose.xlu0.c.b16.start [1/8] %v293, 128
        %1497 = vxpose.xlu0.c.b16.cont [2/8] 0, 128
        %1498 = vxpose.xlu0.c.b16.cont [3/8] 0, 128
        %1499 = vxpose.xlu0.c.b16.cont [4/8] 0, 128
        %1500 = vxpose.xlu0.c.b16.cont [5/8] 0, 128
        %1501 = vxpose.xlu0.c.b16.cont [6/8] 0, 128
        %1502 = vxpose.xlu0.c.b16.cont [7/8] 0, 128
        %1503 = vxpose.xlu0.c.b16.end [8/8] 0, 128
        %v1504 = vpop.trf.xlu0
        %v1505 = vpop.trf.xlu0
        %v1506 = vpop.trf.xlu0
        %v1507 = vpop.trf.xlu0
        %v1508 = vpop.trf.xlu0
        %v1509 = vpop.trf.xlu0
        %v1510 = vpop.trf.xlu0
        %v1511 = vpop.trf.xlu0
        %v1513 = vsel %vm501, %v1504, 0
        %v1516 = vsel %vm505, %v1418, 0
        %1518 = vmatprep.subr.bf16.mxu0 0
        %1519 = vmatpush1.bf16.msra.mxu0 %v1516
        %1520 = vmatprep.subr.bf16.mxu0 0
        %1521 = vmatpush1.bf16.msra.mxu0 0
        %1522 = vmatprep.subr.bf16.mxu0 0
        %1523 = vmatpush1.bf16.msra.mxu0 0
        %1524 = vmatprep.subr.bf16.mxu0 0
        %1525 = vmatpush1.bf16.msra.mxu0 0
        %1526 = vmatprep.subr.bf16.mxu0 0
        %1527 = vmatpush1.bf16.msra.mxu0 0
        %1528 = vmatprep.subr.bf16.mxu0 0
        %1529 = vmatpush1.bf16.msra.mxu0 0
        %1530 = vmatprep.subr.bf16.mxu0 0
        %1531 = vmatpush1.bf16.msra.mxu0 0
        %1532 = vmatprep.subr.bf16.mxu0 0
        %1533 = vmatpush1.bf16.msra.mxu0 0
        %1534 = vmatprep.subr.bf16.mxu0 0
        %1535 = vmatpush1.bf16.msra.mxu0 0
        %1536 = vmatprep.subr.bf16.mxu0 0
        %1537 = vmatpush1.bf16.msra.mxu0 0
        %1538 = vmatprep.subr.bf16.mxu0 0
        %1539 = vmatpush1.bf16.msra.mxu0 0
        %1540 = vmatprep.subr.bf16.mxu0 0
        %1541 = vmatpush1.bf16.msra.mxu0 0
        %1542 = vmatprep.subr.bf16.mxu0 0
        %1543 = vmatpush1.bf16.msra.mxu0 0
        %1544 = vmatprep.subr.bf16.mxu0 0
        %1545 = vmatpush1.bf16.msra.mxu0 0
        %1546 = vmatprep.subr.bf16.mxu0 0
        %1547 = vmatpush1.bf16.msra.mxu0 0
        %1548 = vmatprep.subr.bf16.mxu0 0
        %1549 = vmatpush1.bf16.msra.mxu0 0
        %1550 = vmatprep.mubr.bf16.mxu0 0
        %1551 = vmatmul.mubr.bf16.gmra.mrb[0].mxu0 %v1513
        %v1552 = vpop.f32.mrb[0].mxu0
        %v1553 = vadd.f32 %v1433, %v1552
        %v1554 = vpop.f32.mrb[0].mxu0
        %v1555 = vpop.f32.mrb[0].mxu0
        %v1556 = vpop.f32.mrb[0].mxu0
        %1557 = vdwg.mxu0
        %1558 = vxpose.xlu0.c.b16.start [1/8] %v294, 128
        %1559 = vxpose.xlu0.c.b16.cont [2/8] 0, 128
        %1560 = vxpose.xlu0.c.b16.cont [3/8] 0, 128
        %1561 = vxpose.xlu0.c.b16.cont [4/8] 0, 128
        %1562 = vxpose.xlu0.c.b16.cont [5/8] 0, 128
        %1563 = vxpose.xlu0.c.b16.cont [6/8] 0, 128
        %1564 = vxpose.xlu0.c.b16.cont [7/8] 0, 128
        %1565 = vxpose.xlu0.c.b16.end [8/8] 0, 128
        %v1566 = vpop.trf.xlu0
        %v1567 = vpop.trf.xlu0
        %v1568 = vpop.trf.xlu0
        %v1569 = vpop.trf.xlu0
        %v1570 = vpop.trf.xlu0
        %v1571 = vpop.trf.xlu0
        %v1572 = vpop.trf.xlu0
        %v1573 = vpop.trf.xlu0
        %v1575 = vsel %vm501, %v1566, 0
        %v1578 = vsel %vm505, %v1419, 0
        %1580 = vmatprep.subr.bf16.mxu0 0
        %1581 = vmatpush1.bf16.msra.mxu0 %v1578
        %1582 = vmatprep.subr.bf16.mxu0 0
        %1583 = vmatpush1.bf16.msra.mxu0 0
        %1584 = vmatprep.subr.bf16.mxu0 0
        %1585 = vmatpush1.bf16.msra.mxu0 0
        %1586 = vmatprep.subr.bf16.mxu0 0
        %1587 = vmatpush1.bf16.msra.mxu0 0
        %1588 = vmatprep.subr.bf16.mxu0 0
        %1589 = vmatpush1.bf16.msra.mxu0 0
        %1590 = vmatprep.subr.bf16.mxu0 0
        %1591 = vmatpush1.bf16.msra.mxu0 0
        %1592 = vmatprep.subr.bf16.mxu0 0
        %1593 = vmatpush1.bf16.msra.mxu0 0
        %1594 = vmatprep.subr.bf16.mxu0 0
        %1595 = vmatpush1.bf16.msra.mxu0 0
        %1596 = vmatprep.subr.bf16.mxu0 0
        %1597 = vmatpush1.bf16.msra.mxu0 0
        %1598 = vmatprep.subr.bf16.mxu0 0
        %1599 = vmatpush1.bf16.msra.mxu0 0
        %1600 = vmatprep.subr.bf16.mxu0 0
        %1601 = vmatpush1.bf16.msra.mxu0 0
        %1602 = vmatprep.subr.bf16.mxu0 0
        %1603 = vmatpush1.bf16.msra.mxu0 0
        %1604 = vmatprep.subr.bf16.mxu0 0
        %1605 = vmatpush1.bf16.msra.mxu0 0
        %1606 = vmatprep.subr.bf16.mxu0 0
        %1607 = vmatpush1.bf16.msra.mxu0 0
        %1608 = vmatprep.subr.bf16.mxu0 0
        %1609 = vmatpush1.bf16.msra.mxu0 0
        %1610 = vmatprep.subr.bf16.mxu0 0
        %1611 = vmatpush1.bf16.msra.mxu0 0
        %1612 = vmatprep.mubr.bf16.mxu0 0
        %1613 = vmatmul.mubr.bf16.gmra.mrb[0].mxu0 %v1575
        %v1614 = vpop.f32.mrb[0].mxu0
        %v1615 = vadd.f32 %v1433, %v1614
        %v1616 = vpop.f32.mrb[0].mxu0
        %v1617 = vpop.f32.mrb[0].mxu0
        %v1618 = vpop.f32.mrb[0].mxu0
        %1619 = vdwg.mxu0
        %1620 = vxpose.xlu0.c.b16.start [1/8] %v295, 128
        %1621 = vxpose.xlu0.c.b16.cont [2/8] 0, 128
        %1622 = vxpose.xlu0.c.b16.cont [3/8] 0, 128
        %1623 = vxpose.xlu0.c.b16.cont [4/8] 0, 128
        %1624 = vxpose.xlu0.c.b16.cont [5/8] 0, 128
        %1625 = vxpose.xlu0.c.b16.cont [6/8] 0, 128
        %1626 = vxpose.xlu0.c.b16.cont [7/8] 0, 128
        %1627 = vxpose.xlu0.c.b16.end [8/8] 0, 128
        %v1628 = vpop.trf.xlu0
        %v1629 = vpop.trf.xlu0
        %v1630 = vpop.trf.xlu0
        %v1631 = vpop.trf.xlu0
        %v1632 = vpop.trf.xlu0
        %v1633 = vpop.trf.xlu0
        %v1634 = vpop.trf.xlu0
        %v1635 = vpop.trf.xlu0
        %v1637 = vsel %vm501, %v1628, 0
        %v1640 = vsel %vm505, %v1420, 0
        %1642 = vmatprep.subr.bf16.mxu0 0
        %1643 = vmatpush1.bf16.msra.mxu0 %v1640
        %1644 = vmatprep.subr.bf16.mxu0 0
        %1645 = vmatpush1.bf16.msra.mxu0 0
        %1646 = vmatprep.subr.bf16.mxu0 0
        %1647 = vmatpush1.bf16.msra.mxu0 0
        %1648 = vmatprep.subr.bf16.mxu0 0
        %1649 = vmatpush1.bf16.msra.mxu0 0
        %1650 = vmatprep.subr.bf16.mxu0 0
        %1651 = vmatpush1.bf16.msra.mxu0 0
        %1652 = vmatprep.subr.bf16.mxu0 0
        %1653 = vmatpush1.bf16.msra.mxu0 0
        %1654 = vmatprep.subr.bf16.mxu0 0
        %1655 = vmatpush1.bf16.msra.mxu0 0
        %1656 = vmatprep.subr.bf16.mxu0 0
        %1657 = vmatpush1.bf16.msra.mxu0 0
        %1658 = vmatprep.subr.bf16.mxu0 0
        %1659 = vmatpush1.bf16.msra.mxu0 0
        %1660 = vmatprep.subr.bf16.mxu0 0
        %1661 = vmatpush1.bf16.msra.mxu0 0
        %1662 = vmatprep.subr.bf16.mxu0 0
        %1663 = vmatpush1.bf16.msra.mxu0 0
        %1664 = vmatprep.subr.bf16.mxu0 0
        %1665 = vmatpush1.bf16.msra.mxu0 0
        %1666 = vmatprep.subr.bf16.mxu0 0
        %1667 = vmatpush1.bf16.msra.mxu0 0
        %1668 = vmatprep.subr.bf16.mxu0 0
        %1669 = vmatpush1.bf16.msra.mxu0 0
        %1670 = vmatprep.subr.bf16.mxu0 0
        %1671 = vmatpush1.bf16.msra.mxu0 0
        %1672 = vmatprep.subr.bf16.mxu0 0
        %1673 = vmatpush1.bf16.msra.mxu0 0
        %1674 = vmatprep.mubr.bf16.mxu0 0
        %1675 = vmatmul.mubr.bf16.gmra.mrb[0].mxu0 %v1637
        %v1676 = vpop.f32.mrb[0].mxu0
        %v1677 = vadd.f32 %v1433, %v1676
        %v1678 = vpop.f32.mrb[0].mxu0
        %v1679 = vpop.f32.mrb[0].mxu0
        %v1680 = vpop.f32.mrb[0].mxu0
        %1681 = vdwg.mxu0
        %1682 = vxpose.xlu0.c.b16.start [1/8] %v296, 128
        %1683 = vxpose.xlu0.c.b16.cont [2/8] 0, 128
        %1684 = vxpose.xlu0.c.b16.cont [3/8] 0, 128
        %1685 = vxpose.xlu0.c.b16.cont [4/8] 0, 128
        %1686 = vxpose.xlu0.c.b16.cont [5/8] 0, 128
        %1687 = vxpose.xlu0.c.b16.cont [6/8] 0, 128
        %1688 = vxpose.xlu0.c.b16.cont [7/8] 0, 128
        %1689 = vxpose.xlu0.c.b16.end [8/8] 0, 128
        %v1690 = vpop.trf.xlu0
        %v1691 = vpop.trf.xlu0
        %v1692 = vpop.trf.xlu0
        %v1693 = vpop.trf.xlu0
        %v1694 = vpop.trf.xlu0
        %v1695 = vpop.trf.xlu0
        %v1696 = vpop.trf.xlu0
        %v1697 = vpop.trf.xlu0
        %v1699 = vsel %vm501, %v1690, 0
        %v1702 = vsel %vm505, %v1421, 0
        %1704 = vmatprep.subr.bf16.mxu0 0
        %1705 = vmatpush1.bf16.msra.mxu0 %v1702
        %1706 = vmatprep.subr.bf16.mxu0 0
        %1707 = vmatpush1.bf16.msra.mxu0 0
        %1708 = vmatprep.subr.bf16.mxu0 0
        %1709 = vmatpush1.bf16.msra.mxu0 0
        %1710 = vmatprep.subr.bf16.mxu0 0
        %1711 = vmatpush1.bf16.msra.mxu0 0
        %1712 = vmatprep.subr.bf16.mxu0 0
        %1713 = vmatpush1.bf16.msra.mxu0 0
        %1714 = vmatprep.subr.bf16.mxu0 0
        %1715 = vmatpush1.bf16.msra.mxu0 0
        %1716 = vmatprep.subr.bf16.mxu0 0
        %1717 = vmatpush1.bf16.msra.mxu0 0
        %1718 = vmatprep.subr.bf16.mxu0 0
        %1719 = vmatpush1.bf16.msra.mxu0 0
        %1720 = vmatprep.subr.bf16.mxu0 0
        %1721 = vmatpush1.bf16.msra.mxu0 0
        %1722 = vmatprep.subr.bf16.mxu0 0
        %1723 = vmatpush1.bf16.msra.mxu0 0
        %1724 = vmatprep.subr.bf16.mxu0 0
        %1725 = vmatpush1.bf16.msra.mxu0 0
        %1726 = vmatprep.subr.bf16.mxu0 0
        %1727 = vmatpush1.bf16.msra.mxu0 0
        %1728 = vmatprep.subr.bf16.mxu0 0
        %1729 = vmatpush1.bf16.msra.mxu0 0
        %1730 = vmatprep.subr.bf16.mxu0 0
        %1731 = vmatpush1.bf16.msra.mxu0 0
        %1732 = vmatprep.subr.bf16.mxu0 0
        %1733 = vmatpush1.bf16.msra.mxu0 0
        %1734 = vmatprep.subr.bf16.mxu0 0
        %1735 = vmatpush1.bf16.msra.mxu0 0
        %1736 = vmatprep.mubr.bf16.mxu0 0
        %1737 = vmatmul.mubr.bf16.gmra.mrb[0].mxu0 %v1699
        %v1738 = vpop.f32.mrb[0].mxu0
        %v1739 = vadd.f32 %v1433, %v1738
        %v1740 = vpop.f32.mrb[0].mxu0
        %v1741 = vpop.f32.mrb[0].mxu0
        %v1742 = vpop.f32.mrb[0].mxu0
        %1743 = vdwg.mxu0
        %1744 = vxpose.xlu0.c.b16.start [1/8] %v297, 128
        %1745 = vxpose.xlu0.c.b16.cont [2/8] 0, 128
        %1746 = vxpose.xlu0.c.b16.cont [3/8] 0, 128
        %1747 = vxpose.xlu0.c.b16.cont [4/8] 0, 128
        %1748 = vxpose.xlu0.c.b16.cont [5/8] 0, 128
        %1749 = vxpose.xlu0.c.b16.cont [6/8] 0, 128
        %1750 = vxpose.xlu0.c.b16.cont [7/8] 0, 128
        %1751 = vxpose.xlu0.c.b16.end [8/8] 0, 128
        %v1752 = vpop.trf.xlu0
        %v1753 = vpop.trf.xlu0
        %v1754 = vpop.trf.xlu0
        %v1755 = vpop.trf.xlu0
        %v1756 = vpop.trf.xlu0
        %v1757 = vpop.trf.xlu0
        %v1758 = vpop.trf.xlu0
        %v1759 = vpop.trf.xlu0
        %v1761 = vsel %vm501, %v1752, 0
        %v1764 = vsel %vm505, %v1422, 0
        %1766 = vmatprep.subr.bf16.mxu0 0
        %1767 = vmatpush1.bf16.msra.mxu0 %v1764
        %1768 = vmatprep.subr.bf16.mxu0 0
        %1769 = vmatpush1.bf16.msra.mxu0 0
        %1770 = vmatprep.subr.bf16.mxu0 0
        %1771 = vmatpush1.bf16.msra.mxu0 0
        %1772 = vmatprep.subr.bf16.mxu0 0
        %1773 = vmatpush1.bf16.msra.mxu0 0
        %1774 = vmatprep.subr.bf16.mxu0 0
        %1775 = vmatpush1.bf16.msra.mxu0 0
        %1776 = vmatprep.subr.bf16.mxu0 0
        %1777 = vmatpush1.bf16.msra.mxu0 0
        %1778 = vmatprep.subr.bf16.mxu0 0
        %1779 = vmatpush1.bf16.msra.mxu0 0
        %1780 = vmatprep.subr.bf16.mxu0 0
        %1781 = vmatpush1.bf16.msra.mxu0 0
        %1782 = vmatprep.subr.bf16.mxu0 0
        %1783 = vmatpush1.bf16.msra.mxu0 0
        %1784 = vmatprep.subr.bf16.mxu0 0
        %1785 = vmatpush1.bf16.msra.mxu0 0
        %1786 = vmatprep.subr.bf16.mxu0 0
        %1787 = vmatpush1.bf16.msra.mxu0 0
        %1788 = vmatprep.subr.bf16.mxu0 0
        %1789 = vmatpush1.bf16.msra.mxu0 0
        %1790 = vmatprep.subr.bf16.mxu0 0
        %1791 = vmatpush1.bf16.msra.mxu0 0
        %1792 = vmatprep.subr.bf16.mxu0 0
        %1793 = vmatpush1.bf16.msra.mxu0 0
        %1794 = vmatprep.subr.bf16.mxu0 0
        %1795 = vmatpush1.bf16.msra.mxu0 0
        %1796 = vmatprep.subr.bf16.mxu0 0
        %1797 = vmatpush1.bf16.msra.mxu0 0
        %1798 = vmatprep.mubr.bf16.mxu0 0
        %1799 = vmatmul.mubr.bf16.gmra.mrb[0].mxu0 %v1761
        %v1800 = vpop.f32.mrb[0].mxu0
        %v1801 = vadd.f32 %v1433, %v1800
        %v1802 = vpop.f32.mrb[0].mxu0
        %v1803 = vpop.f32.mrb[0].mxu0
        %v1804 = vpop.f32.mrb[0].mxu0
        %1805 = vdwg.mxu0
        %1806 = vxpose.xlu0.c.b16.start [1/8] %v298, 128
        %1807 = vxpose.xlu0.c.b16.cont [2/8] 0, 128
        %1808 = vxpose.xlu0.c.b16.cont [3/8] 0, 128
        %1809 = vxpose.xlu0.c.b16.cont [4/8] 0, 128
        %1810 = vxpose.xlu0.c.b16.cont [5/8] 0, 128
        %1811 = vxpose.xlu0.c.b16.cont [6/8] 0, 128
        %1812 = vxpose.xlu0.c.b16.cont [7/8] 0, 128
        %1813 = vxpose.xlu0.c.b16.end [8/8] 0, 128
        %v1814 = vpop.trf.xlu0
        %v1815 = vpop.trf.xlu0
        %v1816 = vpop.trf.xlu0
        %v1817 = vpop.trf.xlu0
        %v1818 = vpop.trf.xlu0
        %v1819 = vpop.trf.xlu0
        %v1820 = vpop.trf.xlu0
        %v1821 = vpop.trf.xlu0
        %v1823 = vsel %vm501, %v1814, 0
        %v1826 = vsel %vm505, %v1423, 0
        %1828 = vmatprep.subr.bf16.mxu0 0
        %1829 = vmatpush1.bf16.msra.mxu0 %v1826
        %1830 = vmatprep.subr.bf16.mxu0 0
        %1831 = vmatpush1.bf16.msra.mxu0 0
        %1832 = vmatprep.subr.bf16.mxu0 0
        %1833 = vmatpush1.bf16.msra.mxu0 0
        %1834 = vmatprep.subr.bf16.mxu0 0
        %1835 = vmatpush1.bf16.msra.mxu0 0
        %1836 = vmatprep.subr.bf16.mxu0 0
        %1837 = vmatpush1.bf16.msra.mxu0 0
        %1838 = vmatprep.subr.bf16.mxu0 0
        %1839 = vmatpush1.bf16.msra.mxu0 0
        %1840 = vmatprep.subr.bf16.mxu0 0
        %1841 = vmatpush1.bf16.msra.mxu0 0
        %1842 = vmatprep.subr.bf16.mxu0 0
        %1843 = vmatpush1.bf16.msra.mxu0 0
        %1844 = vmatprep.subr.bf16.mxu0 0
        %1845 = vmatpush1.bf16.msra.mxu0 0
        %1846 = vmatprep.subr.bf16.mxu0 0
        %1847 = vmatpush1.bf16.msra.mxu0 0
        %1848 = vmatprep.subr.bf16.mxu0 0
        %1849 = vmatpush1.bf16.msra.mxu0 0
        %1850 = vmatprep.subr.bf16.mxu0 0
        %1851 = vmatpush1.bf16.msra.mxu0 0
        %1852 = vmatprep.subr.bf16.mxu0 0
        %1853 = vmatpush1.bf16.msra.mxu0 0
        %1854 = vmatprep.subr.bf16.mxu0 0
        %1855 = vmatpush1.bf16.msra.mxu0 0
        %1856 = vmatprep.subr.bf16.mxu0 0
        %1857 = vmatpush1.bf16.msra.mxu0 0
        %1858 = vmatprep.subr.bf16.mxu0 0
        %1859 = vmatpush1.bf16.msra.mxu0 0
        %1860 = vmatprep.mubr.bf16.mxu0 0
        %1861 = vmatmul.mubr.bf16.gmra.mrb[0].mxu0 %v1823
        %v1862 = vpop.f32.mrb[0].mxu0
        %v1863 = vadd.f32 %v1433, %v1862
        %v1864 = vpop.f32.mrb[0].mxu0
        %v1865 = vpop.f32.mrb[0].mxu0
        %v1866 = vpop.f32.mrb[0].mxu0
        %1867 = vdwg.mxu0
        %1868 = vxpose.xlu0.c.b16.start [1/8] %v299, 128
        %1869 = vxpose.xlu0.c.b16.cont [2/8] 0, 128
        %1870 = vxpose.xlu0.c.b16.cont [3/8] 0, 128
        %1871 = vxpose.xlu0.c.b16.cont [4/8] 0, 128
        %1872 = vxpose.xlu0.c.b16.cont [5/8] 0, 128
        %1873 = vxpose.xlu0.c.b16.cont [6/8] 0, 128
        %1874 = vxpose.xlu0.c.b16.cont [7/8] 0, 128
        %1875 = vxpose.xlu0.c.b16.end [8/8] 0, 128
        %v1876 = vpop.trf.xlu0
        %v1877 = vpop.trf.xlu0
        %v1878 = vpop.trf.xlu0
        %v1879 = vpop.trf.xlu0
        %v1880 = vpop.trf.xlu0
        %v1881 = vpop.trf.xlu0
        %v1882 = vpop.trf.xlu0
        %v1883 = vpop.trf.xlu0
        %v1885 = vsel %vm501, %v1876, 0
        %v1888 = vsel %vm505, %v1424, 0
        %1890 = vmatprep.subr.bf16.mxu0 0
        %1891 = vmatpush1.bf16.msra.mxu0 %v1888
        %1892 = vmatprep.subr.bf16.mxu0 0
        %1893 = vmatpush1.bf16.msra.mxu0 0
        %1894 = vmatprep.subr.bf16.mxu0 0
        %1895 = vmatpush1.bf16.msra.mxu0 0
        %1896 = vmatprep.subr.bf16.mxu0 0
        %1897 = vmatpush1.bf16.msra.mxu0 0
        %1898 = vmatprep.subr.bf16.mxu0 0
        %1899 = vmatpush1.bf16.msra.mxu0 0
        %1900 = vmatprep.subr.bf16.mxu0 0
        %1901 = vmatpush1.bf16.msra.mxu0 0
        %1902 = vmatprep.subr.bf16.mxu0 0
        %1903 = vmatpush1.bf16.msra.mxu0 0
        %1904 = vmatprep.subr.bf16.mxu0 0
        %1905 = vmatpush1.bf16.msra.mxu0 0
        %1906 = vmatprep.subr.bf16.mxu0 0
        %1907 = vmatpush1.bf16.msra.mxu0 0
        %1908 = vmatprep.subr.bf16.mxu0 0
        %1909 = vmatpush1.bf16.msra.mxu0 0
        %1910 = vmatprep.subr.bf16.mxu0 0
        %1911 = vmatpush1.bf16.msra.mxu0 0
        %1912 = vmatprep.subr.bf16.mxu0 0
        %1913 = vmatpush1.bf16.msra.mxu0 0
        %1914 = vmatprep.subr.bf16.mxu0 0
        %1915 = vmatpush1.bf16.msra.mxu0 0
        %1916 = vmatprep.subr.bf16.mxu0 0
        %1917 = vmatpush1.bf16.msra.mxu0 0
        %1918 = vmatprep.subr.bf16.mxu0 0
        %1919 = vmatpush1.bf16.msra.mxu0 0
        %1920 = vmatprep.subr.bf16.mxu0 0
        %1921 = vmatpush1.bf16.msra.mxu0 0
        %1922 = vmatprep.mubr.bf16.mxu0 0
        %1923 = vmatmul.mubr.bf16.gmra.mrb[0].mxu0 %v1885
        %v1924 = vpop.f32.mrb[0].mxu0
        %v1925 = vadd.f32 %v1433, %v1924
        %v1926 = vpop.f32.mrb[0].mxu0
        %v1927 = vpop.f32.mrb[0].mxu0
        %v1928 = vpop.f32.mrb[0].mxu0
        %1929 = vdwg.mxu0
        %1930 = vxpose.xlu0.c.b16.start [1/8] %v300, 128
        %1931 = vxpose.xlu0.c.b16.cont [2/8] 0, 128
        %1932 = vxpose.xlu0.c.b16.cont [3/8] 0, 128
        %1933 = vxpose.xlu0.c.b16.cont [4/8] 0, 128
        %1934 = vxpose.xlu0.c.b16.cont [5/8] 0, 128
        %1935 = vxpose.xlu0.c.b16.cont [6/8] 0, 128
        %1936 = vxpose.xlu0.c.b16.cont [7/8] 0, 128
        %1937 = vxpose.xlu0.c.b16.end [8/8] 0, 128
        %v1938 = vpop.trf.xlu0
        %v1939 = vpop.trf.xlu0
        %v1940 = vpop.trf.xlu0
        %v1941 = vpop.trf.xlu0
        %v1942 = vpop.trf.xlu0
        %v1943 = vpop.trf.xlu0
        %v1944 = vpop.trf.xlu0
        %v1945 = vpop.trf.xlu0
        %v1947 = vsel %vm501, %v1938, 0
        %v1950 = vsel %vm505, %v1425, 0
        %1952 = vmatprep.subr.bf16.mxu0 0
        %1953 = vmatpush1.bf16.msra.mxu0 %v1950
        %1954 = vmatprep.subr.bf16.mxu0 0
        %1955 = vmatpush1.bf16.msra.mxu0 0
        %1956 = vmatprep.subr.bf16.mxu0 0
        %1957 = vmatpush1.bf16.msra.mxu0 0
        %1958 = vmatprep.subr.bf16.mxu0 0
        %1959 = vmatpush1.bf16.msra.mxu0 0
        %1960 = vmatprep.subr.bf16.mxu0 0
        %1961 = vmatpush1.bf16.msra.mxu0 0
        %1962 = vmatprep.subr.bf16.mxu0 0
        %1963 = vmatpush1.bf16.msra.mxu0 0
        %1964 = vmatprep.subr.bf16.mxu0 0
        %1965 = vmatpush1.bf16.msra.mxu0 0
        %1966 = vmatprep.subr.bf16.mxu0 0
        %1967 = vmatpush1.bf16.msra.mxu0 0
        %1968 = vmatprep.subr.bf16.mxu0 0
        %1969 = vmatpush1.bf16.msra.mxu0 0
        %1970 = vmatprep.subr.bf16.mxu0 0
        %1971 = vmatpush1.bf16.msra.mxu0 0
        %1972 = vmatprep.subr.bf16.mxu0 0
        %1973 = vmatpush1.bf16.msra.mxu0 0
        %1974 = vmatprep.subr.bf16.mxu0 0
        %1975 = vmatpush1.bf16.msra.mxu0 0
        %1976 = vmatprep.subr.bf16.mxu0 0
        %1977 = vmatpush1.bf16.msra.mxu0 0
        %1978 = vmatprep.subr.bf16.mxu0 0
        %1979 = vmatpush1.bf16.msra.mxu0 0
        %1980 = vmatprep.subr.bf16.mxu0 0
        %1981 = vmatpush1.bf16.msra.mxu0 0
        %1982 = vmatprep.subr.bf16.mxu0 0
        %1983 = vmatpush1.bf16.msra.mxu0 0
        %1984 = vmatprep.mubr.bf16.mxu0 0
        %1985 = vmatmul.mubr.bf16.gmra.mrb[0].mxu0 %v1947
        %v1986 = vpop.f32.mrb[0].mxu0
        %v1987 = vadd.f32 %v1433, %v1986
        %v1988 = vpop.f32.mrb[0].mxu0
        %v1989 = vpop.f32.mrb[0].mxu0
        %v1990 = vpop.f32.mrb[0].mxu0
        %1991 = vdwg.mxu0
        %1992 = vxpose.xlu0.c.b16.start [1/8] %v301, 128
        %1993 = vxpose.xlu0.c.b16.cont [2/8] 0, 128
        %1994 = vxpose.xlu0.c.b16.cont [3/8] 0, 128
        %1995 = vxpose.xlu0.c.b16.cont [4/8] 0, 128
        %1996 = vxpose.xlu0.c.b16.cont [5/8] 0, 128
        %1997 = vxpose.xlu0.c.b16.cont [6/8] 0, 128
        %1998 = vxpose.xlu0.c.b16.cont [7/8] 0, 128
        %1999 = vxpose.xlu0.c.b16.end [8/8] 0, 128
        %v2000 = vpop.trf.xlu0
        %v2001 = vpop.trf.xlu0
        %v2002 = vpop.trf.xlu0
        %v2003 = vpop.trf.xlu0
        %v2004 = vpop.trf.xlu0
        %v2005 = vpop.trf.xlu0
        %v2006 = vpop.trf.xlu0
        %v2007 = vpop.trf.xlu0
        %v2009 = vsel %vm501, %v2000, 0
        %v2012 = vsel %vm505, %v1426, 0
        %2014 = vmatprep.subr.bf16.mxu0 0
        %2015 = vmatpush1.bf16.msra.mxu0 %v2012
        %2016 = vmatprep.subr.bf16.mxu0 0
        %2017 = vmatpush1.bf16.msra.mxu0 0
        %2018 = vmatprep.subr.bf16.mxu0 0
        %2019 = vmatpush1.bf16.msra.mxu0 0
        %2020 = vmatprep.subr.bf16.mxu0 0
        %2021 = vmatpush1.bf16.msra.mxu0 0
        %2022 = vmatprep.subr.bf16.mxu0 0
        %2023 = vmatpush1.bf16.msra.mxu0 0
        %2024 = vmatprep.subr.bf16.mxu0 0
        %2025 = vmatpush1.bf16.msra.mxu0 0
        %2026 = vmatprep.subr.bf16.mxu0 0
        %2027 = vmatpush1.bf16.msra.mxu0 0
        %2028 = vmatprep.subr.bf16.mxu0 0
        %2029 = vmatpush1.bf16.msra.mxu0 0
        %2030 = vmatprep.subr.bf16.mxu0 0
        %2031 = vmatpush1.bf16.msra.mxu0 0
        %2032 = vmatprep.subr.bf16.mxu0 0
        %2033 = vmatpush1.bf16.msra.mxu0 0
        %2034 = vmatprep.subr.bf16.mxu0 0
        %2035 = vmatpush1.bf16.msra.mxu0 0
        %2036 = vmatprep.subr.bf16.mxu0 0
        %2037 = vmatpush1.bf16.msra.mxu0 0
        %2038 = vmatprep.subr.bf16.mxu0 0
        %2039 = vmatpush1.bf16.msra.mxu0 0
        %2040 = vmatprep.subr.bf16.mxu0 0
        %2041 = vmatpush1.bf16.msra.mxu0 0
        %2042 = vmatprep.subr.bf16.mxu0 0
        %2043 = vmatpush1.bf16.msra.mxu0 0
        %2044 = vmatprep.subr.bf16.mxu0 0
        %2045 = vmatpush1.bf16.msra.mxu0 0
        %2046 = vmatprep.mubr.bf16.mxu0 0
        %2047 = vmatmul.mubr.bf16.gmra.mrb[0].mxu0 %v2009
        %v2048 = vpop.f32.mrb[0].mxu0
        %v2049 = vadd.f32 %v1433, %v2048
        %v2050 = vpop.f32.mrb[0].mxu0
        %v2051 = vpop.f32.mrb[0].mxu0
        %v2052 = vpop.f32.mrb[0].mxu0
        %2053 = vdwg.mxu0
        %2054 = vxpose.xlu0.c.b16.start [1/8] %v302, 128
        %2055 = vxpose.xlu0.c.b16.cont [2/8] 0, 128
        %2056 = vxpose.xlu0.c.b16.cont [3/8] 0, 128
        %2057 = vxpose.xlu0.c.b16.cont [4/8] 0, 128
        %2058 = vxpose.xlu0.c.b16.cont [5/8] 0, 128
        %2059 = vxpose.xlu0.c.b16.cont [6/8] 0, 128
        %2060 = vxpose.xlu0.c.b16.cont [7/8] 0, 128
        %2061 = vxpose.xlu0.c.b16.end [8/8] 0, 128
        %v2062 = vpop.trf.xlu0
        %v2063 = vpop.trf.xlu0
        %v2064 = vpop.trf.xlu0
        %v2065 = vpop.trf.xlu0
        %v2066 = vpop.trf.xlu0
        %v2067 = vpop.trf.xlu0
        %v2068 = vpop.trf.xlu0
        %v2069 = vpop.trf.xlu0
        %v2071 = vsel %vm501, %v2062, 0
        %v2074 = vsel %vm505, %v1427, 0
        %2076 = vmatprep.subr.bf16.mxu0 0
        %2077 = vmatpush1.bf16.msra.mxu0 %v2074
        %2078 = vmatprep.subr.bf16.mxu0 0
        %2079 = vmatpush1.bf16.msra.mxu0 0
        %2080 = vmatprep.subr.bf16.mxu0 0
        %2081 = vmatpush1.bf16.msra.mxu0 0
        %2082 = vmatprep.subr.bf16.mxu0 0
        %2083 = vmatpush1.bf16.msra.mxu0 0
        %2084 = vmatprep.subr.bf16.mxu0 0
        %2085 = vmatpush1.bf16.msra.mxu0 0
        %2086 = vmatprep.subr.bf16.mxu0 0
        %2087 = vmatpush1.bf16.msra.mxu0 0
        %2088 = vmatprep.subr.bf16.mxu0 0
        %2089 = vmatpush1.bf16.msra.mxu0 0
        %2090 = vmatprep.subr.bf16.mxu0 0
        %2091 = vmatpush1.bf16.msra.mxu0 0
        %2092 = vmatprep.subr.bf16.mxu0 0
        %2093 = vmatpush1.bf16.msra.mxu0 0
        %2094 = vmatprep.subr.bf16.mxu0 0
        %2095 = vmatpush1.bf16.msra.mxu0 0
        %2096 = vmatprep.subr.bf16.mxu0 0
        %2097 = vmatpush1.bf16.msra.mxu0 0
        %2098 = vmatprep.subr.bf16.mxu0 0
        %2099 = vmatpush1.bf16.msra.mxu0 0
        %2100 = vmatprep.subr.bf16.mxu0 0
        %2101 = vmatpush1.bf16.msra.mxu0 0
        %2102 = vmatprep.subr.bf16.mxu0 0
        %2103 = vmatpush1.bf16.msra.mxu0 0
        %2104 = vmatprep.subr.bf16.mxu0 0
        %2105 = vmatpush1.bf16.msra.mxu0 0
        %2106 = vmatprep.subr.bf16.mxu0 0
        %2107 = vmatpush1.bf16.msra.mxu0 0
        %2108 = vmatprep.mubr.bf16.mxu0 0
        %2109 = vmatmul.mubr.bf16.gmra.mrb[0].mxu0 %v2071
        %v2110 = vpop.f32.mrb[0].mxu0
        %v2111 = vadd.f32 %v1433, %v2110
        %v2112 = vpop.f32.mrb[0].mxu0
        %v2113 = vpop.f32.mrb[0].mxu0
        %v2114 = vpop.f32.mrb[0].mxu0
        %2115 = vdwg.mxu0
        %2116 = vxpose.xlu0.c.b16.start [1/8] %v303, 128
        %2117 = vxpose.xlu0.c.b16.cont [2/8] 0, 128
        %2118 = vxpose.xlu0.c.b16.cont [3/8] 0, 128
        %2119 = vxpose.xlu0.c.b16.cont [4/8] 0, 128
        %2120 = vxpose.xlu0.c.b16.cont [5/8] 0, 128
        %2121 = vxpose.xlu0.c.b16.cont [6/8] 0, 128
        %2122 = vxpose.xlu0.c.b16.cont [7/8] 0, 128
        %2123 = vxpose.xlu0.c.b16.end [8/8] 0, 128
        %v2124 = vpop.trf.xlu0
        %v2125 = vpop.trf.xlu0
        %v2126 = vpop.trf.xlu0
        %v2127 = vpop.trf.xlu0
        %v2128 = vpop.trf.xlu0
        %v2129 = vpop.trf.xlu0
        %v2130 = vpop.trf.xlu0
        %v2131 = vpop.trf.xlu0
        %v2133 = vsel %vm501, %v2124, 0
        %v2136 = vsel %vm505, %v1428, 0
        %2138 = vmatprep.subr.bf16.mxu0 0
        %2139 = vmatpush1.bf16.msra.mxu0 %v2136
        %2140 = vmatprep.subr.bf16.mxu0 0
        %2141 = vmatpush1.bf16.msra.mxu0 0
        %2142 = vmatprep.subr.bf16.mxu0 0
        %2143 = vmatpush1.bf16.msra.mxu0 0
        %2144 = vmatprep.subr.bf16.mxu0 0
        %2145 = vmatpush1.bf16.msra.mxu0 0
        %2146 = vmatprep.subr.bf16.mxu0 0
        %2147 = vmatpush1.bf16.msra.mxu0 0
        %2148 = vmatprep.subr.bf16.mxu0 0
        %2149 = vmatpush1.bf16.msra.mxu0 0
        %2150 = vmatprep.subr.bf16.mxu0 0
        %2151 = vmatpush1.bf16.msra.mxu0 0
        %2152 = vmatprep.subr.bf16.mxu0 0
        %2153 = vmatpush1.bf16.msra.mxu0 0
        %2154 = vmatprep.subr.bf16.mxu0 0
        %2155 = vmatpush1.bf16.msra.mxu0 0
        %2156 = vmatprep.subr.bf16.mxu0 0
        %2157 = vmatpush1.bf16.msra.mxu0 0
        %2158 = vmatprep.subr.bf16.mxu0 0
        %2159 = vmatpush1.bf16.msra.mxu0 0
        %2160 = vmatprep.subr.bf16.mxu0 0
        %2161 = vmatpush1.bf16.msra.mxu0 0
        %2162 = vmatprep.subr.bf16.mxu0 0
        %2163 = vmatpush1.bf16.msra.mxu0 0
        %2164 = vmatprep.subr.bf16.mxu0 0
        %2165 = vmatpush1.bf16.msra.mxu0 0
        %2166 = vmatprep.subr.bf16.mxu0 0
        %2167 = vmatpush1.bf16.msra.mxu0 0
        %2168 = vmatprep.subr.bf16.mxu0 0
        %2169 = vmatpush1.bf16.msra.mxu0 0
        %2170 = vmatprep.mubr.bf16.mxu0 0
        %2171 = vmatmul.mubr.bf16.gmra.mrb[0].mxu0 %v2133
        %v2172 = vpop.f32.mrb[0].mxu0
        %v2173 = vadd.f32 %v1433, %v2172
        %v2174 = vpop.f32.mrb[0].mxu0
        %v2175 = vpop.f32.mrb[0].mxu0
        %v2176 = vpop.f32.mrb[0].mxu0
        %2177 = vdwg.mxu0
        %2178 = vxpose.xlu0.c.b16.start [1/8] %v304, 128
        %2179 = vxpose.xlu0.c.b16.cont [2/8] 0, 128
        %2180 = vxpose.xlu0.c.b16.cont [3/8] 0, 128
        %2181 = vxpose.xlu0.c.b16.cont [4/8] 0, 128
        %2182 = vxpose.xlu0.c.b16.cont [5/8] 0, 128
        %2183 = vxpose.xlu0.c.b16.cont [6/8] 0, 128
        %2184 = vxpose.xlu0.c.b16.cont [7/8] 0, 128
        %2185 = vxpose.xlu0.c.b16.end [8/8] 0, 128
        %v2186 = vpop.trf.xlu0
        %v2187 = vpop.trf.xlu0
        %v2188 = vpop.trf.xlu0
        %v2189 = vpop.trf.xlu0
        %v2190 = vpop.trf.xlu0
        %v2191 = vpop.trf.xlu0
        %v2192 = vpop.trf.xlu0
        %v2193 = vpop.trf.xlu0
        %v2195 = vsel %vm501, %v2186, 0
        %v2198 = vsel %vm505, %v1429, 0
        %2200 = vmatprep.subr.bf16.mxu0 0
        %2201 = vmatpush1.bf16.msra.mxu0 %v2198
        %2202 = vmatprep.subr.bf16.mxu0 0
        %2203 = vmatpush1.bf16.msra.mxu0 0
        %2204 = vmatprep.subr.bf16.mxu0 0
        %2205 = vmatpush1.bf16.msra.mxu0 0
        %2206 = vmatprep.subr.bf16.mxu0 0
        %2207 = vmatpush1.bf16.msra.mxu0 0
        %2208 = vmatprep.subr.bf16.mxu0 0
        %2209 = vmatpush1.bf16.msra.mxu0 0
        %2210 = vmatprep.subr.bf16.mxu0 0
        %2211 = vmatpush1.bf16.msra.mxu0 0
        %2212 = vmatprep.subr.bf16.mxu0 0
        %2213 = vmatpush1.bf16.msra.mxu0 0
        %2214 = vmatprep.subr.bf16.mxu0 0
        %2215 = vmatpush1.bf16.msra.mxu0 0
        %2216 = vmatprep.subr.bf16.mxu0 0
        %2217 = vmatpush1.bf16.msra.mxu0 0
        %2218 = vmatprep.subr.bf16.mxu0 0
        %2219 = vmatpush1.bf16.msra.mxu0 0
        %2220 = vmatprep.subr.bf16.mxu0 0
        %2221 = vmatpush1.bf16.msra.mxu0 0
        %2222 = vmatprep.subr.bf16.mxu0 0
        %2223 = vmatpush1.bf16.msra.mxu0 0
        %2224 = vmatprep.subr.bf16.mxu0 0
        %2225 = vmatpush1.bf16.msra.mxu0 0
        %2226 = vmatprep.subr.bf16.mxu0 0
        %2227 = vmatpush1.bf16.msra.mxu0 0
        %2228 = vmatprep.subr.bf16.mxu0 0
        %2229 = vmatpush1.bf16.msra.mxu0 0
        %2230 = vmatprep.subr.bf16.mxu0 0
        %2231 = vmatpush1.bf16.msra.mxu0 0
        %2232 = vmatprep.mubr.bf16.mxu0 0
        %2233 = vmatmul.mubr.bf16.gmra.mrb[0].mxu0 %v2195
        %v2234 = vpop.f32.mrb[0].mxu0
        %v2235 = vadd.f32 %v1433, %v2234
        %v2236 = vpop.f32.mrb[0].mxu0
        %v2237 = vpop.f32.mrb[0].mxu0
        %v2238 = vpop.f32.mrb[0].mxu0
        %2239 = vdwg.mxu0
        %2240 = vxpose.xlu0.c.b16.start [1/8] %v305, 128
        %2241 = vxpose.xlu0.c.b16.cont [2/8] 0, 128
        %2242 = vxpose.xlu0.c.b16.cont [3/8] 0, 128
        %2243 = vxpose.xlu0.c.b16.cont [4/8] 0, 128
        %2244 = vxpose.xlu0.c.b16.cont [5/8] 0, 128
        %2245 = vxpose.xlu0.c.b16.cont [6/8] 0, 128
        %2246 = vxpose.xlu0.c.b16.cont [7/8] 0, 128
        %2247 = vxpose.xlu0.c.b16.end [8/8] 0, 128
        %v2248 = vpop.trf.xlu0
        %v2249 = vpop.trf.xlu0
        %v2250 = vpop.trf.xlu0
        %v2251 = vpop.trf.xlu0
        %v2252 = vpop.trf.xlu0
        %v2253 = vpop.trf.xlu0
        %v2254 = vpop.trf.xlu0
        %v2255 = vpop.trf.xlu0
        %v2257 = vsel %vm501, %v2248, 0
        %v2260 = vsel %vm505, %v1430, 0
        %2262 = vmatprep.subr.bf16.mxu0 0
        %2263 = vmatpush1.bf16.msra.mxu0 %v2260
        %2264 = vmatprep.subr.bf16.mxu0 0
        %2265 = vmatpush1.bf16.msra.mxu0 0
        %2266 = vmatprep.subr.bf16.mxu0 0
        %2267 = vmatpush1.bf16.msra.mxu0 0
        %2268 = vmatprep.subr.bf16.mxu0 0
        %2269 = vmatpush1.bf16.msra.mxu0 0
        %2270 = vmatprep.subr.bf16.mxu0 0
        %2271 = vmatpush1.bf16.msra.mxu0 0
        %2272 = vmatprep.subr.bf16.mxu0 0
        %2273 = vmatpush1.bf16.msra.mxu0 0
        %2274 = vmatprep.subr.bf16.mxu0 0
        %2275 = vmatpush1.bf16.msra.mxu0 0
        %2276 = vmatprep.subr.bf16.mxu0 0
        %2277 = vmatpush1.bf16.msra.mxu0 0
        %2278 = vmatprep.subr.bf16.mxu0 0
        %2279 = vmatpush1.bf16.msra.mxu0 0
        %2280 = vmatprep.subr.bf16.mxu0 0
        %2281 = vmatpush1.bf16.msra.mxu0 0
        %2282 = vmatprep.subr.bf16.mxu0 0
        %2283 = vmatpush1.bf16.msra.mxu0 0
        %2284 = vmatprep.subr.bf16.mxu0 0
        %2285 = vmatpush1.bf16.msra.mxu0 0
        %2286 = vmatprep.subr.bf16.mxu0 0
        %2287 = vmatpush1.bf16.msra.mxu0 0
        %2288 = vmatprep.subr.bf16.mxu0 0
        %2289 = vmatpush1.bf16.msra.mxu0 0
        %2290 = vmatprep.subr.bf16.mxu0 0
        %2291 = vmatpush1.bf16.msra.mxu0 0
        %2292 = vmatprep.subr.bf16.mxu0 0
        %2293 = vmatpush1.bf16.msra.mxu0 0
        %2294 = vmatprep.mubr.bf16.mxu0 0
        %2295 = vmatmul.mubr.bf16.gmra.mrb[0].mxu0 %v2257
        %v2296 = vpop.f32.mrb[0].mxu0
        %v2297 = vadd.f32 %v1433, %v2296
        %v2298 = vpop.f32.mrb[0].mxu0
        %v2299 = vpop.f32.mrb[0].mxu0
        %v2300 = vpop.f32.mrb[0].mxu0
        %2301 = vdwg.mxu0
        %2302 = vxpose.xlu0.c.b16.start [1/8] %v306, 128
        %2303 = vxpose.xlu0.c.b16.cont [2/8] 0, 128
        %2304 = vxpose.xlu0.c.b16.cont [3/8] 0, 128
        %2305 = vxpose.xlu0.c.b16.cont [4/8] 0, 128
        %2306 = vxpose.xlu0.c.b16.cont [5/8] 0, 128
        %2307 = vxpose.xlu0.c.b16.cont [6/8] 0, 128
        %2308 = vxpose.xlu0.c.b16.cont [7/8] 0, 128
        %2309 = vxpose.xlu0.c.b16.end [8/8] 0, 128
        %v2310 = vpop.trf.xlu0
        %v2311 = vpop.trf.xlu0
        %v2312 = vpop.trf.xlu0
        %v2313 = vpop.trf.xlu0
        %v2314 = vpop.trf.xlu0
        %v2315 = vpop.trf.xlu0
        %v2316 = vpop.trf.xlu0
        %v2317 = vpop.trf.xlu0
        %v2319 = vsel %vm501, %v2310, 0
        %v2322 = vsel %vm505, %v1431, 0
        %2324 = vmatprep.subr.bf16.mxu0 0
        %2325 = vmatpush1.bf16.msra.mxu0 %v2322
        %2326 = vmatprep.subr.bf16.mxu0 0
        %2327 = vmatpush1.bf16.msra.mxu0 0
        %2328 = vmatprep.subr.bf16.mxu0 0
        %2329 = vmatpush1.bf16.msra.mxu0 0
        %2330 = vmatprep.subr.bf16.mxu0 0
        %2331 = vmatpush1.bf16.msra.mxu0 0
        %2332 = vmatprep.subr.bf16.mxu0 0
        %2333 = vmatpush1.bf16.msra.mxu0 0
        %2334 = vmatprep.subr.bf16.mxu0 0
        %2335 = vmatpush1.bf16.msra.mxu0 0
        %2336 = vmatprep.subr.bf16.mxu0 0
        %2337 = vmatpush1.bf16.msra.mxu0 0
        %2338 = vmatprep.subr.bf16.mxu0 0
        %2339 = vmatpush1.bf16.msra.mxu0 0
        %2340 = vmatprep.subr.bf16.mxu0 0
        %2341 = vmatpush1.bf16.msra.mxu0 0
        %2342 = vmatprep.subr.bf16.mxu0 0
        %2343 = vmatpush1.bf16.msra.mxu0 0
        %2344 = vmatprep.subr.bf16.mxu0 0
        %2345 = vmatpush1.bf16.msra.mxu0 0
        %2346 = vmatprep.subr.bf16.mxu0 0
        %2347 = vmatpush1.bf16.msra.mxu0 0
        %2348 = vmatprep.subr.bf16.mxu0 0
        %2349 = vmatpush1.bf16.msra.mxu0 0
        %2350 = vmatprep.subr.bf16.mxu0 0
        %2351 = vmatpush1.bf16.msra.mxu0 0
        %2352 = vmatprep.subr.bf16.mxu0 0
        %2353 = vmatpush1.bf16.msra.mxu0 0
        %2354 = vmatprep.subr.bf16.mxu0 0
        %2355 = vmatpush1.bf16.msra.mxu0 0
        %2356 = vmatprep.mubr.bf16.mxu0 0
        %2357 = vmatmul.mubr.bf16.gmra.mrb[0].mxu0 %v2319
        %v2358 = vpop.f32.mrb[0].mxu0
        %v2359 = vadd.f32 %v1433, %v2358
        %v2360 = vpop.f32.mrb[0].mxu0
        %v2361 = vpop.f32.mrb[0].mxu0
        %v2362 = vpop.f32.mrb[0].mxu0
        %2363 = vdwg.mxu0
        %2364 = vxpose.xlu0.c.b16.start [1/8] %v307, 128
        %2365 = vxpose.xlu0.c.b16.cont [2/8] 0, 128
        %2366 = vxpose.xlu0.c.b16.cont [3/8] 0, 128
        %2367 = vxpose.xlu0.c.b16.cont [4/8] 0, 128
        %2368 = vxpose.xlu0.c.b16.cont [5/8] 0, 128
        %2369 = vxpose.xlu0.c.b16.cont [6/8] 0, 128
        %2370 = vxpose.xlu0.c.b16.cont [7/8] 0, 128
        %2371 = vxpose.xlu0.c.b16.end [8/8] 0, 128
        %v2372 = vpop.trf.xlu0
        %v2373 = vpop.trf.xlu0
        %v2374 = vpop.trf.xlu0
        %v2375 = vpop.trf.xlu0
        %v2376 = vpop.trf.xlu0
        %v2377 = vpop.trf.xlu0
        %v2378 = vpop.trf.xlu0
        %v2379 = vpop.trf.xlu0
        %v2381 = vsel %vm501, %v2372, 0
        %v2384 = vsel %vm505, %v1432, 0
        %2386 = vmatprep.subr.bf16.mxu0 0
        %2387 = vmatpush1.bf16.msra.mxu0 %v2384
        %2388 = vmatprep.subr.bf16.mxu0 0
        %2389 = vmatpush1.bf16.msra.mxu0 0
        %2390 = vmatprep.subr.bf16.mxu0 0
        %2391 = vmatpush1.bf16.msra.mxu0 0
        %2392 = vmatprep.subr.bf16.mxu0 0
        %2393 = vmatpush1.bf16.msra.mxu0 0
        %2394 = vmatprep.subr.bf16.mxu0 0
        %2395 = vmatpush1.bf16.msra.mxu0 0
        %2396 = vmatprep.subr.bf16.mxu0 0
        %2397 = vmatpush1.bf16.msra.mxu0 0
        %2398 = vmatprep.subr.bf16.mxu0 0
        %2399 = vmatpush1.bf16.msra.mxu0 0
        %2400 = vmatprep.subr.bf16.mxu0 0
        %2401 = vmatpush1.bf16.msra.mxu0 0
        %2402 = vmatprep.subr.bf16.mxu0 0
        %2403 = vmatpush1.bf16.msra.mxu0 0
        %2404 = vmatprep.subr.bf16.mxu0 0
        %2405 = vmatpush1.bf16.msra.mxu0 0
        %2406 = vmatprep.subr.bf16.mxu0 0
        %2407 = vmatpush1.bf16.msra.mxu0 0
        %2408 = vmatprep.subr.bf16.mxu0 0
        %2409 = vmatpush1.bf16.msra.mxu0 0
        %2410 = vmatprep.subr.bf16.mxu0 0
        %2411 = vmatpush1.bf16.msra.mxu0 0
        %2412 = vmatprep.subr.bf16.mxu0 0
        %2413 = vmatpush1.bf16.msra.mxu0 0
        %2414 = vmatprep.subr.bf16.mxu0 0
        %2415 = vmatpush1.bf16.msra.mxu0 0
        %2416 = vmatprep.subr.bf16.mxu0 0
        %2417 = vmatpush1.bf16.msra.mxu0 0
        %2418 = vmatprep.mubr.bf16.mxu0 0
        %2419 = vmatmul.mubr.bf16.gmra.mrb[0].mxu0 %v2381
        %v2420 = vpop.f32.mrb[0].mxu0
        %v2421 = vadd.f32 %v1433, %v2420
        %v2422 = vpop.f32.mrb[0].mxu0
        %v2423 = vpop.f32.mrb[0].mxu0
        %v2424 = vpop.f32.mrb[0].mxu0
        %2425 = vdwg.mxu0
        %2426 = vst [vmem:[%s261] sm:$0xff] %v1491
        %2427 = vst [vmem:[%s261 + $0x8] sm:$0xff] %v1553
        %2428 = vst [vmem:[%s261 + $0x10] sm:$0xff] %v1615
        %2429 = vst [vmem:[%s261 + $0x18] sm:$0xff] %v1677
        %2430 = vst [vmem:[%s261 + $0x20] sm:$0xff] %v1739
        %2431 = vst [vmem:[%s261 + $0x28] sm:$0xff] %v1801
        %2432 = vst [vmem:[%s261 + $0x30] sm:$0xff] %v1863
        %2433 = vst [vmem:[%s261 + $0x38] sm:$0xff] %v1925
        %2434 = vst [vmem:[%s261 + $0x40] sm:$0xff] %v1987
        %2435 = vst [vmem:[%s261 + $0x48] sm:$0xff] %v2049
        %2436 = vst [vmem:[%s261 + $0x50] sm:$0xff] %v2111
        %2437 = vst [vmem:[%s261 + $0x58] sm:$0xff] %v2173
        %2438 = vst [vmem:[%s261 + $0x60] sm:$0xff] %v2235
        %2439 = vst [vmem:[%s261 + $0x68] sm:$0xff] %v2297
        %2440 = vst [vmem:[%s261 + $0x70] sm:$0xff] %v2359
        %2441 = vst [vmem:[%s261 + $0x78] sm:$0xff] %v2421
        %s2442 = sand.u32 %s164, 1
        %s2443 = scalar_lea.sflag [#allocation3], %s2442
        %s2444 = sand.u32 %s164, 1
        %s2445 = smul.addr %s2444, 128
        %s2446 = scalar_lea.vmem [#allocation2], %s2445
        // Predicated region
        $region45: #{tpu_custom_call.1} parent=43 // pred_check
          %p2447 = pneg %p174
        $region46: #{tpu_custom_call.1} parent=43 // pred_check_branch
          %2449 = sbr.rel (%p2447) target = $region48
        $region47: #{tpu_custom_call.1} parent=43 // pred_region
          %s2450 = smul.u32 16, %s20
          %s2452 = ssub.s32 2048, 2048
          %2453 = vsyncadd %s2443, %s2452
          %s2454 = smul.addr %s2450, 128
          %s2455 = scalar_lea.hbm %s6, %s2454
          %s2456 = sshll.u32 %s2446, 4
          %s2457 = int_to_ptr.vmem [resolvable:$true] %s2456
          %2462 = dma.vmem_to_hbm [thread:$0]  %s2457, 2048, %s2455, %s2443, 128, 128, 8
        $region48: #{tpu_custom_call.1} parent=43 // pred_fallthru
          _
      $region44: #{tpu_custom_call.1} parent=5 // pred_fallthru
        _
      %p2463 = scmp.le.s32.totalorder 2, %s15
      // Predicated region
      $region49: #{tpu_custom_call.1} parent=5 // pred_check
        %p2464 = pneg %p2463
      $region50: #{tpu_custom_call.1} parent=5 // pred_check_branch
        %2466 = sbr.rel (%p2464) target = $region52
      $region51: #{tpu_custom_call.1} parent=5 // pred_region
        %s2467 = ssub.s32 %s15, 2
        // Predicated region
        $region53: #{tpu_custom_call.1} parent=51 // pred_check
          %p2468 = pneg %p180
        $region54: #{tpu_custom_call.1} parent=51 // pred_check_branch
          %2470 = sbr.rel (%p2468) target = $region56
        $region55: #{tpu_custom_call.1} parent=51 // pred_region
          %s2471 = sand.u32 %s165, 1
          %s2472 = scalar_lea.sflag [#allocation3], %s2471
          %s2473 = sand.u32 %s165, 1
          %s2474 = smul.addr %s2473, 128
          %s2475 = scalar_lea.vmem [#allocation2], %s2474
          %2476 = dma.done %s2472, 2048
        $region56: #{tpu_custom_call.1} parent=51 // pred_fallthru
          _
      $region52: #{tpu_custom_call.1} parent=5 // pred_fallthru
        _
    $region6: #{tpu_custom_call.1} parent=1 // loop_footer
      %s19 = sadd.s32 1, %s15
    $region7: #{tpu_custom_call.1} parent=1 // loop_footer_branch
      %14 = sbr.rel target = $region3
    $region8: #{tpu_custom_call.1} parent=1 // loop_exit
      _
    %2477 = vsyncpa [#allocation3], 1
    %s2478 = scalar_lea.sflag [#allocation3], 1
    %2479 = vsyncpa %s2478, 1

</llo_original>
